<compile_context>
chip_gen: v5e
topology: v5e:2x2
jax: 0.10.0
libtpu: 0.0.40
codegen_flags: <defaults>
</compile_context>

<pallas_src>
import math

import jax
import jax.numpy as jnp
import numpy as np
from jax.experimental import pallas as pl
from jax.experimental.pallas import tpu as pltpu

# ----- SAB hyper-parameters (match the PyTorch module defaults) -----
DIM = 64                 # embed dim
NUM_HEADS = 4
HEAD_DIM = DIM // NUM_HEADS
FF_HID = 4 * DIM         # ff_hidden_dim default = 4 * dim
LN_EPS = 1e-5
LEAKY_SLOPE = 0.3
ROW_TARGET = 512         # fused rows/grid step: multiple of 128 (v5e) and 256 (v6e/v7x)


def _mm(a, b):
    # [M, K] @ [K, N] on the MXU with fp32 accumulation.
    return jax.lax.dot_general(
        a, b, (((1,), (0,)), ((), ())), preferred_element_type=jnp.float32)


def _layernorm(x, gamma, beta):
    mu = jnp.mean(x, axis=-1, keepdims=True)
    xc = x - mu
    var = jnp.mean(xc * xc, axis=-1, keepdims=True)
    inv = jax.lax.rsqrt(var + LN_EPS)
    return xc * inv * gamma + beta


def _softmax(s):
    s = s - jnp.max(s, axis=-1, keepdims=True)
    e = jnp.exp(s)
    return e * pl.reciprocal(jnp.sum(e, axis=-1, keepdims=True), approx=True)


def _sab_kernel(x_ref,
                ln1g_ref, ln1b_ref,
                wqkv_ref, bqkv_ref, wo_ref, bo_ref,
                ln2g_ref, ln2b_ref,
                w1_ref, b1_ref, w2_ref, b2_ref,
                out_ref):
    Bt, N, D = x_ref.shape
    R = Bt * N
    scale = 1.0 / float(np.sqrt(HEAD_DIM))

    # ---- pre-LN multi-head self-attention ----
    xn = _layernorm(x_ref[...].astype(jnp.float32).reshape(R, D),
                    ln1g_ref[...], ln1b_ref[...])
    xn_b = xn.astype(jnp.bfloat16)

    # One full-width fused projection: [R, 64] @ [64, 192] -> q|k|v lanes.
    qkv = _mm(xn_b, wqkv_ref[...]) + bqkv_ref[...]            # [R, 3*D] f32
    q_all = qkv[:, 0:D] * scale
    k_all = qkv[:, D:2 * D]
    v_all = qkv[:, 2 * D:3 * D]

    # Per-head attention core (tiny FLOPs; kept as the proven 3-D batched
    # einsum pattern — the expensive row-wise matmuls are already merged).
    head_outs = []
    for h in range(NUM_HEADS):                                # static unroll
        sl = slice(h * HEAD_DIM, (h + 1) * HEAD_DIM)
        q3 = q_all[:, sl].reshape(Bt, N, HEAD_DIM).astype(jnp.bfloat16)
        k3 = k_all[:, sl].reshape(Bt, N, HEAD_DIM).astype(jnp.bfloat16)
        v3 = v_all[:, sl].reshape(Bt, N, HEAD_DIM).astype(jnp.bfloat16)
        s = jnp.einsum("bqd,bkd->bqk", q3, k3,
                       preferred_element_type=jnp.float32)    # [Bt, N, N]
        p = _softmax(s)
        oh = jnp.einsum("bqk,bkd->bqd", p.astype(jnp.bfloat16), v3,
                        preferred_element_type=jnp.float32)   # [Bt, N, HD]
        head_outs.append(oh.reshape(R, HEAD_DIM))

    # Lane-concat heads -> single K=64 output projection (no per-head folds).
    o = jnp.concatenate(head_outs, axis=-1)                   # [R, D]
    attn = _mm(o.astype(jnp.bfloat16), wo_ref[...]) + bo_ref[...]

    # Residual: re-read x from VMEM instead of keeping it live across the
    # attention region (cheap vld; lowers vreg pressure).
    x1 = x_ref[...].astype(jnp.float32).reshape(R, D) + attn

    # ---- pre-LN feed-forward (LeakyReLU 0.3) + residual ----
    xn2 = _layernorm(x1, ln2g_ref[...], ln2b_ref[...])
    ff = _mm(xn2.astype(jnp.bfloat16), w1_ref[...]) + b1_ref[...]   # [R, FF]
    ff = jnp.where(ff > 0, ff, LEAKY_SLOPE * ff)
    ff = _mm(ff.astype(jnp.bfloat16), w2_ref[...]) + b2_ref[...]    # [R, D]
    y = x1 + ff

    out_ref[...] = y.reshape(Bt, N, D).astype(out_ref.dtype)


# ----------------------------- wrapper -----------------------------
PARAM_ORDER = ("ln1g", "ln1b", "wqkv", "bqkv", "wo", "bo",
               "ln2g", "ln2b", "w1", "b1", "w2", "b2")
BF16_PARAMS = frozenset({"wqkv", "wo", "w1", "w2"})


def _pick_batch_tile(B, N):
    # Target ~512 fused rows per grid step (multiple of 128 for v5e MXUs and
    # 256 for v6e/v7x); never fewer than 2 grid steps when B >= 2 so the
    # "parallel" batch axis can shard across both v7x TensorCores.
    bt = max(1, ROW_TARGET // max(N, 1))
    bt = min(bt, B)
    if B >= 2:
        bt = min(bt, -(-B // 2))
    return bt


def _full_spec(shape):
    n = len(shape)
    return pl.BlockSpec(shape, lambda b, n=n: (0,) * n)  # grid-invariant block


@jax.jit
def sab_forward(x, params):
    B, N, D = x.shape
    Bt = _pick_batch_tile(B, N)
    G = -(-B // Bt)
    Bpad = G * Bt
    xp = x if Bpad == B else jnp.pad(x, ((0, Bpad - B), (0, 0), (0, 0)))

    weights = []
    for name in PARAM_ORDER:
        w = params[name]
        if name in BF16_PARAMS:
            w = w.astype(jnp.bfloat16)   # bf16 matmul inputs, f32 accumulation
        weights.append(w)

    in_specs = [pl.BlockSpec((Bt, N, D), lambda b: (b, 0, 0))] + \
               [_full_spec(w.shape) for w in weights]
    out_spec = pl.BlockSpec((Bt, N, D), lambda b: (b, 0, 0))

    out = pl.pallas_call(
        _sab_kernel,
        out_shape=jax.ShapeDtypeStruct((Bpad, N, D), jnp.float32),
        grid_spec=pltpu.PrefetchScalarGridSpec(
            num_scalar_prefetch=0,
            grid=(G,),
            in_specs=in_specs,
            out_specs=out_spec,
        ),
        compiler_params=pltpu.CompilerParams(
            dimension_semantics=("parallel",)),
    )(xp, *weights)
    return out[:B] if Bpad != B else out


# ----------------------------- params -----------------------------
def init_params(seed=0):
    key = jax.random.PRNGKey(seed)
    keys = jax.random.split(key, 12)

    def nrm(k, shape, scale=0.1):
        return (scale * jax.random.normal(k, shape)).astype(jnp.float32)

    p = {}
    p["ln1g"] = (1.0 + 0.05 * jax.random.normal(keys[0], (1, DIM))).astype(jnp.float32)
    p["ln1b"] = nrm(keys[1], (1, DIM), 0.05)
    # fused qkv in-projection, stored [in, out]: [DIM, 3*DIM]; head h of q/k/v
    # occupies output columns h*HEAD_DIM:(h+1)*HEAD_DIM of its 64-wide slab.
    p["wqkv"] = nrm(keys[2], (DIM, 3 * DIM))
    p["bqkv"] = nrm(keys[3], (1, 3 * DIM), 0.05)
    # out-projection, stored [in, out]: [DIM, DIM]
    p["wo"] = nrm(keys[4], (DIM, DIM))
    p["bo"] = nrm(keys[5], (1, DIM), 0.05)
    p["ln2g"] = (1.0 + 0.05 * jax.random.normal(keys[6], (1, DIM))).astype(jnp.float32)
    p["ln2b"] = nrm(keys[7], (1, DIM), 0.05)
    p["w1"] = nrm(keys[8], (DIM, FF_HID))
    p["b1"] = nrm(keys[9], (1, FF_HID), 0.05)
    p["w2"] = nrm(keys[10], (FF_HID, DIM))
    p["b2"] = nrm(keys[11], (1, DIM), 0.05)
    return p


# ----------------- pure-JAX reference (sanity check) -----------------
def reference_forward(x, p):
    def ln(v, g, b):
        mu = jnp.mean(v, axis=-1, keepdims=True)
        var = jnp.mean((v - mu) ** 2, axis=-1, keepdims=True)
        return (v - mu) / jnp.sqrt(var + LN_EPS) * g + b

    B, N, D = x.shape
    xn = ln(x, p["ln1g"], p["ln1b"])
    qkv = xn @ p["wqkv"] + p["bqkv"]
    q, k, v = jnp.split(qkv, 3, axis=-1)
    q = q.reshape(B, N, NUM_HEADS, HEAD_DIM)
    k = k.reshape(B, N, NUM_HEADS, HEAD_DIM)
    v = v.reshape(B, N, NUM_HEADS, HEAD_DIM)
    s = jnp.einsum("bqhd,bkhd->bhqk", q, k) / np.sqrt(HEAD_DIM)
    pr = jax.nn.softmax(s, axis=-1)
    o = jnp.einsum("bhqk,bkhd->bqhd", pr, v).reshape(B, N, D)
    x = x + o @ p["wo"] + p["bo"]
    xn = ln(x, p["ln2g"], p["ln2b"])
    ff = xn @ p["w1"] + p["b1"]
    ff = jnp.where(ff > 0, ff, LEAKY_SLOPE * ff)
    return x + ff @ p["w2"] + p["b2"]


if __name__ == "__main__":
    params = init_params(seed=0)
    # B=4 (even, 2 grid steps) and B=3 (odd -> batch padding path).
    for B, N in [(4, 8), (3, 8)]:
        key = jax.random.PRNGKey(0)
        x = jax.random.normal(key, (B, N, DIM), dtype=jnp.float32)

        out = jax.block_until_ready(sab_forward(x, params))
        ref = jax.block_until_ready(reference_forward(x, params))

        assert out.shape == (B, N, DIM)
        assert np.allclose(np.asarray(out), np.asarray(ref),
                           rtol=2e-2, atol=2e-2), (
            f"Pallas SAB output diverges from JAX reference (B={B})")

    print("KERNEL_OK")
</pallas_src>

<mosaic_0001>
module attributes {stable_mosaic.version = 11 : i64} {
  func.func @_sab_kernel(%arg0: i32, %arg1: memref<2x8x64xf32, #tpu.memory_space<vmem>>, %arg2: memref<1x64xf32, #tpu.memory_space<vmem>>, %arg3: memref<1x64xf32, #tpu.memory_space<vmem>>, %arg4: memref<64x192xbf16, #tpu.memory_space<vmem>>, %arg5: memref<1x192xf32, #tpu.memory_space<vmem>>, %arg6: memref<64x64xbf16, #tpu.memory_space<vmem>>, %arg7: memref<1x64xf32, #tpu.memory_space<vmem>>, %arg8: memref<1x64xf32, #tpu.memory_space<vmem>>, %arg9: memref<1x64xf32, #tpu.memory_space<vmem>>, %arg10: memref<64x256xbf16, #tpu.memory_space<vmem>>, %arg11: memref<1x256xf32, #tpu.memory_space<vmem>>, %arg12: memref<256x64xbf16, #tpu.memory_space<vmem>>, %arg13: memref<1x64xf32, #tpu.memory_space<vmem>>, %arg14: memref<2x8x64xf32, #tpu.memory_space<vmem>>) attributes {dimension_semantics = [#tpu.dimension_semantics<parallel>], iteration_bounds = array<i64: 2>, scalar_prefetch = 0 : i64, scratch_operands = 0 : i64, tpu.core_type = #tpu.core_type<tc>, window_params = [{transform_indices = @transform_0, window_bounds = array<i64: 2, 8, 64>}, {pipeline_mode = #tpu.pipeline_mode<synchronous>, transform_indices = @transform_1, window_bounds = array<i64: 1, 64>}, {pipeline_mode = #tpu.pipeline_mode<synchronous>, transform_indices = @transform_2, window_bounds = array<i64: 1, 64>}, {pipeline_mode = #tpu.pipeline_mode<synchronous>, transform_indices = @transform_3, window_bounds = array<i64: 64, 192>}, {pipeline_mode = #tpu.pipeline_mode<synchronous>, transform_indices = @transform_4, window_bounds = array<i64: 1, 192>}, {pipeline_mode = #tpu.pipeline_mode<synchronous>, transform_indices = @transform_5, window_bounds = array<i64: 64, 64>}, {pipeline_mode = #tpu.pipeline_mode<synchronous>, transform_indices = @transform_6, window_bounds = array<i64: 1, 64>}, {pipeline_mode = #tpu.pipeline_mode<synchronous>, transform_indices = @transform_7, window_bounds = array<i64: 1, 64>}, {pipeline_mode = #tpu.pipeline_mode<synchronous>, transform_indices = @transform_8, window_bounds = array<i64: 1, 64>}, {pipeline_mode = #tpu.pipeline_mode<synchronous>, transform_indices = @transform_9, window_bounds = array<i64: 64, 256>}, {pipeline_mode = #tpu.pipeline_mode<synchronous>, transform_indices = @transform_10, window_bounds = array<i64: 1, 256>}, {pipeline_mode = #tpu.pipeline_mode<synchronous>, transform_indices = @transform_11, window_bounds = array<i64: 256, 64>}, {pipeline_mode = #tpu.pipeline_mode<synchronous>, transform_indices = @transform_12, window_bounds = array<i64: 1, 64>}, {transform_indices = @transform_13, window_bounds = array<i64: 2, 8, 64>}]} {
    %c0 = arith.constant 0 : index
    %c0_0 = arith.constant 0 : index
    %c0_1 = arith.constant 0 : index
    %0 = vector.load %arg1[%c0, %c0_0, %c0_1] : memref<2x8x64xf32, #tpu.memory_space<vmem>>, vector<2x8x64xf32>
    %1 = vector.shape_cast %0 : vector<2x8x64xf32> to vector<16x64xf32>
    %c0_2 = arith.constant 0 : index
    %c0_3 = arith.constant 0 : index
    %2 = vector.load %arg2[%c0_2, %c0_3] : memref<1x64xf32, #tpu.memory_space<vmem>>, vector<1x64xf32>
    %c0_4 = arith.constant 0 : index
    %c0_5 = arith.constant 0 : index
    %3 = vector.load %arg3[%c0_4, %c0_5] : memref<1x64xf32, #tpu.memory_space<vmem>>, vector<1x64xf32>
    %cst = arith.constant dense<0.000000e+00> : vector<16xf32>
    %4 = vector.multi_reduction <add>, %1, %cst [1] : vector<16x64xf32> to vector<16xf32>
    %5 = vector.shape_cast %4 : vector<16xf32> to vector<16x1xf32>
    %cst_6 = arith.constant 6.400000e+01 : f32
    %6 = vector.broadcast %cst_6 : f32 to vector<16x1xf32>
    %7 = arith.divf %5, %6 : vector<16x1xf32>
    %8 = vector.broadcast %7 : vector<16x1xf32> to vector<16x64xf32>
    %9 = arith.subf %1, %8 : vector<16x64xf32>
    %10 = arith.mulf %9, %9 : vector<16x64xf32>
    %cst_7 = arith.constant dense<0.000000e+00> : vector<16xf32>
    %11 = vector.multi_reduction <add>, %10, %cst_7 [1] : vector<16x64xf32> to vector<16xf32>
    %12 = vector.shape_cast %11 : vector<16xf32> to vector<16x1xf32>
    %cst_8 = arith.constant 6.400000e+01 : f32
    %13 = vector.broadcast %cst_8 : f32 to vector<16x1xf32>
    %14 = arith.divf %12, %13 : vector<16x1xf32>
    %cst_9 = arith.constant 9.99999974E-6 : f32
    %15 = vector.broadcast %cst_9 : f32 to vector<16x1xf32>
    %16 = arith.addf %14, %15 : vector<16x1xf32>
    %17 = math.rsqrt %16 : vector<16x1xf32>
    %18 = vector.broadcast %17 : vector<16x1xf32> to vector<16x64xf32>
    %19 = arith.mulf %9, %18 : vector<16x64xf32>
    %20 = vector.broadcast %2 : vector<1x64xf32> to vector<16x64xf32>
    %21 = arith.mulf %19, %20 : vector<16x64xf32>
    %22 = vector.broadcast %3 : vector<1x64xf32> to vector<16x64xf32>
    %23 = arith.addf %21, %22 : vector<16x64xf32>
    %24 = arith.truncf %23 : vector<16x64xf32> to vector<16x64xbf16>
    %c0_10 = arith.constant 0 : index
    %c0_11 = arith.constant 0 : index
    %25 = vector.load %arg4[%c0_10, %c0_11] : memref<64x192xbf16, #tpu.memory_space<vmem>>, vector<64x192xbf16>
    %cst_12 = arith.constant dense<0.000000e+00> : vector<16x192xf32>
    %26 = tpu.matmul %24, %25, %cst_12 {dimension_numbers = #tpu.dot_dimension_numbers<[1], [0], [0], [1], [0, 0, 1, 1], [], []>} : vector<16x64xbf16>, vector<64x192xbf16>, vector<16x192xf32> -> vector<16x192xf32>
    %c0_13 = arith.constant 0 : index
    %c0_14 = arith.constant 0 : index
    %27 = vector.load %arg5[%c0_13, %c0_14] : memref<1x192xf32, #tpu.memory_space<vmem>>, vector<1x192xf32>
    %28 = vector.broadcast %27 : vector<1x192xf32> to vector<16x192xf32>
    %29 = arith.addf %26, %28 : vector<16x192xf32>
    %30 = vector.extract_strided_slice %29 {offsets = [0, 0], sizes = [16, 64], strides = [1, 1]} : vector<16x192xf32> to vector<16x64xf32>
    %cst_15 = arith.constant 2.500000e-01 : f32
    %31 = vector.broadcast %cst_15 : f32 to vector<16x64xf32>
    %32 = arith.mulf %30, %31 : vector<16x64xf32>
    %33 = vector.extract_strided_slice %29 {offsets = [0, 64], sizes = [16, 64], strides = [1, 1]} : vector<16x192xf32> to vector<16x64xf32>
    %34 = vector.extract_strided_slice %29 {offsets = [0, 128], sizes = [16, 64], strides = [1, 1]} : vector<16x192xf32> to vector<16x64xf32>
    %35 = vector.extract_strided_slice %32 {offsets = [0, 0], sizes = [16, 16], strides = [1, 1]} : vector<16x64xf32> to vector<16x16xf32>
    %36 = vector.shape_cast %35 : vector<16x16xf32> to vector<2x8x16xf32>
    %37 = arith.truncf %36 : vector<2x8x16xf32> to vector<2x8x16xbf16>
    %38 = vector.extract_strided_slice %33 {offsets = [0, 0], sizes = [16, 16], strides = [1, 1]} : vector<16x64xf32> to vector<16x16xf32>
    %39 = vector.shape_cast %38 : vector<16x16xf32> to vector<2x8x16xf32>
    %40 = arith.truncf %39 : vector<2x8x16xf32> to vector<2x8x16xbf16>
    %41 = vector.extract_strided_slice %34 {offsets = [0, 0], sizes = [16, 16], strides = [1, 1]} : vector<16x64xf32> to vector<16x16xf32>
    %42 = vector.shape_cast %41 : vector<16x16xf32> to vector<2x8x16xf32>
    %43 = arith.truncf %42 : vector<2x8x16xf32> to vector<2x8x16xbf16>
    "tpu.trace_start"() <{level = 10 : i32, message = "bqd,bkd->bqk"}> : () -> ()
    %cst_16 = arith.constant dense<0.000000e+00> : vector<2x8x8xf32>
    %44 = tpu.matmul %37, %40, %cst_16 {dimension_numbers = #tpu.dot_dimension_numbers<[2], [2], [1], [1], [0, 0, 0, 1, 1, 1], [0], [0]>} : vector<2x8x16xbf16>, vector<2x8x16xbf16>, vector<2x8x8xf32> -> vector<2x8x8xf32>
    "tpu.trace_stop"() : () -> ()
    %cst_17 = arith.constant dense<0xFF800000> : vector<2x8xf32>
    %45 = vector.multi_reduction <maximumf>, %44, %cst_17 [2] : vector<2x8x8xf32> to vector<2x8xf32>
    %46 = vector.shape_cast %45 : vector<2x8xf32> to vector<2x8x1xf32>
    %47 = vector.broadcast %46 : vector<2x8x1xf32> to vector<2x8x8xf32>
    %48 = arith.subf %44, %47 : vector<2x8x8xf32>
    %49 = math.exp %48 : vector<2x8x8xf32>
    %cst_18 = arith.constant dense<0.000000e+00> : vector<2x8xf32>
    %50 = vector.multi_reduction <add>, %49, %cst_18 [2] : vector<2x8x8xf32> to vector<2x8xf32>
    %51 = vector.shape_cast %50 : vector<2x8xf32> to vector<2x8x1xf32>
    %52 = tpu.reciprocal %51 {approx = true} : vector<2x8x1xf32> -> vector<2x8x1xf32>
    %53 = vector.broadcast %52 : vector<2x8x1xf32> to vector<2x8x8xf32>
    %54 = arith.mulf %49, %53 : vector<2x8x8xf32>
    %55 = arith.truncf %54 : vector<2x8x8xf32> to vector<2x8x8xbf16>
    "tpu.trace_start"() <{level = 10 : i32, message = "bqk,bkd->bqd"}> : () -> ()
    %cst_19 = arith.constant dense<0.000000e+00> : vector<2x8x16xf32>
    %56 = tpu.matmul %55, %43, %cst_19 {dimension_numbers = #tpu.dot_dimension_numbers<[2], [1], [1], [2], [0, 0, 0, 1, 1, 2], [0], [0]>} : vector<2x8x8xbf16>, vector<2x8x16xbf16>, vector<2x8x16xf32> -> vector<2x8x16xf32>
    "tpu.trace_stop"() : () -> ()
    %57 = vector.shape_cast %56 : vector<2x8x16xf32> to vector<16x16xf32>
    %58 = vector.extract_strided_slice %32 {offsets = [0, 16], sizes = [16, 16], strides = [1, 1]} : vector<16x64xf32> to vector<16x16xf32>
    %59 = vector.shape_cast %58 : vector<16x16xf32> to vector<2x8x16xf32>
    %60 = arith.truncf %59 : vector<2x8x16xf32> to vector<2x8x16xbf16>
    %61 = vector.extract_strided_slice %33 {offsets = [0, 16], sizes = [16, 16], strides = [1, 1]} : vector<16x64xf32> to vector<16x16xf32>
    %62 = vector.shape_cast %61 : vector<16x16xf32> to vector<2x8x16xf32>
    %63 = arith.truncf %62 : vector<2x8x16xf32> to vector<2x8x16xbf16>
    %64 = vector.extract_strided_slice %34 {offsets = [0, 16], sizes = [16, 16], strides = [1, 1]} : vector<16x64xf32> to vector<16x16xf32>
    %65 = vector.shape_cast %64 : vector<16x16xf32> to vector<2x8x16xf32>
    %66 = arith.truncf %65 : vector<2x8x16xf32> to vector<2x8x16xbf16>
    "tpu.trace_start"() <{level = 10 : i32, message = "bqd,bkd->bqk"}> : () -> ()
    %cst_20 = arith.constant dense<0.000000e+00> : vector<2x8x8xf32>
    %67 = tpu.matmul %60, %63, %cst_20 {dimension_numbers = #tpu.dot_dimension_numbers<[2], [2], [1], [1], [0, 0, 0, 1, 1, 1], [0], [0]>} : vector<2x8x16xbf16>, vector<2x8x16xbf16>, vector<2x8x8xf32> -> vector<2x8x8xf32>
    "tpu.trace_stop"() : () -> ()
    %cst_21 = arith.constant dense<0xFF800000> : vector<2x8xf32>
    %68 = vector.multi_reduction <maximumf>, %67, %cst_21 [2] : vector<2x8x8xf32> to vector<2x8xf32>
    %69 = vector.shape_cast %68 : vector<2x8xf32> to vector<2x8x1xf32>
    %70 = vector.broadcast %69 : vector<2x8x1xf32> to vector<2x8x8xf32>
    %71 = arith.subf %67, %70 : vector<2x8x8xf32>
    %72 = math.exp %71 : vector<2x8x8xf32>
    %cst_22 = arith.constant dense<0.000000e+00> : vector<2x8xf32>
    %73 = vector.multi_reduction <add>, %72, %cst_22 [2] : vector<2x8x8xf32> to vector<2x8xf32>
    %74 = vector.shape_cast %73 : vector<2x8xf32> to vector<2x8x1xf32>
    %75 = tpu.reciprocal %74 {approx = true} : vector<2x8x1xf32> -> vector<2x8x1xf32>
    %76 = vector.broadcast %75 : vector<2x8x1xf32> to vector<2x8x8xf32>
    %77 = arith.mulf %72, %76 : vector<2x8x8xf32>
    %78 = arith.truncf %77 : vector<2x8x8xf32> to vector<2x8x8xbf16>
    "tpu.trace_start"() <{level = 10 : i32, message = "bqk,bkd->bqd"}> : () -> ()
    %cst_23 = arith.constant dense<0.000000e+00> : vector<2x8x16xf32>
    %79 = tpu.matmul %78, %66, %cst_23 {dimension_numbers = #tpu.dot_dimension_numbers<[2], [1], [1], [2], [0, 0, 0, 1, 1, 2], [0], [0]>} : vector<2x8x8xbf16>, vector<2x8x16xbf16>, vector<2x8x16xf32> -> vector<2x8x16xf32>
    "tpu.trace_stop"() : () -> ()
    %80 = vector.shape_cast %79 : vector<2x8x16xf32> to vector<16x16xf32>
    %81 = vector.extract_strided_slice %32 {offsets = [0, 32], sizes = [16, 16], strides = [1, 1]} : vector<16x64xf32> to vector<16x16xf32>
    %82 = vector.shape_cast %81 : vector<16x16xf32> to vector<2x8x16xf32>
    %83 = arith.truncf %82 : vector<2x8x16xf32> to vector<2x8x16xbf16>
    %84 = vector.extract_strided_slice %33 {offsets = [0, 32], sizes = [16, 16], strides = [1, 1]} : vector<16x64xf32> to vector<16x16xf32>
    %85 = vector.shape_cast %84 : vector<16x16xf32> to vector<2x8x16xf32>
    %86 = arith.truncf %85 : vector<2x8x16xf32> to vector<2x8x16xbf16>
    %87 = vector.extract_strided_slice %34 {offsets = [0, 32], sizes = [16, 16], strides = [1, 1]} : vector<16x64xf32> to vector<16x16xf32>
    %88 = vector.shape_cast %87 : vector<16x16xf32> to vector<2x8x16xf32>
    %89 = arith.truncf %88 : vector<2x8x16xf32> to vector<2x8x16xbf16>
    "tpu.trace_start"() <{level = 10 : i32, message = "bqd,bkd->bqk"}> : () -> ()
    %cst_24 = arith.constant dense<0.000000e+00> : vector<2x8x8xf32>
    %90 = tpu.matmul %83, %86, %cst_24 {dimension_numbers = #tpu.dot_dimension_numbers<[2], [2], [1], [1], [0, 0, 0, 1, 1, 1], [0], [0]>} : vector<2x8x16xbf16>, vector<2x8x16xbf16>, vector<2x8x8xf32> -> vector<2x8x8xf32>
    "tpu.trace_stop"() : () -> ()
    %cst_25 = arith.constant dense<0xFF800000> : vector<2x8xf32>
    %91 = vector.multi_reduction <maximumf>, %90, %cst_25 [2] : vector<2x8x8xf32> to vector<2x8xf32>
    %92 = vector.shape_cast %91 : vector<2x8xf32> to vector<2x8x1xf32>
    %93 = vector.broadcast %92 : vector<2x8x1xf32> to vector<2x8x8xf32>
    %94 = arith.subf %90, %93 : vector<2x8x8xf32>
    %95 = math.exp %94 : vector<2x8x8xf32>
    %cst_26 = arith.constant dense<0.000000e+00> : vector<2x8xf32>
    %96 = vector.multi_reduction <add>, %95, %cst_26 [2] : vector<2x8x8xf32> to vector<2x8xf32>
    %97 = vector.shape_cast %96 : vector<2x8xf32> to vector<2x8x1xf32>
    %98 = tpu.reciprocal %97 {approx = true} : vector<2x8x1xf32> -> vector<2x8x1xf32>
    %99 = vector.broadcast %98 : vector<2x8x1xf32> to vector<2x8x8xf32>
    %100 = arith.mulf %95, %99 : vector<2x8x8xf32>
    %101 = arith.truncf %100 : vector<2x8x8xf32> to vector<2x8x8xbf16>
    "tpu.trace_start"() <{level = 10 : i32, message = "bqk,bkd->bqd"}> : () -> ()
    %cst_27 = arith.constant dense<0.000000e+00> : vector<2x8x16xf32>
    %102 = tpu.matmul %101, %89, %cst_27 {dimension_numbers = #tpu.dot_dimension_numbers<[2], [1], [1], [2], [0, 0, 0, 1, 1, 2], [0], [0]>} : vector<2x8x8xbf16>, vector<2x8x16xbf16>, vector<2x8x16xf32> -> vector<2x8x16xf32>
    "tpu.trace_stop"() : () -> ()
    %103 = vector.shape_cast %102 : vector<2x8x16xf32> to vector<16x16xf32>
    %104 = vector.extract_strided_slice %32 {offsets = [0, 48], sizes = [16, 16], strides = [1, 1]} : vector<16x64xf32> to vector<16x16xf32>
    %105 = vector.shape_cast %104 : vector<16x16xf32> to vector<2x8x16xf32>
    %106 = arith.truncf %105 : vector<2x8x16xf32> to vector<2x8x16xbf16>
    %107 = vector.extract_strided_slice %33 {offsets = [0, 48], sizes = [16, 16], strides = [1, 1]} : vector<16x64xf32> to vector<16x16xf32>
    %108 = vector.shape_cast %107 : vector<16x16xf32> to vector<2x8x16xf32>
    %109 = arith.truncf %108 : vector<2x8x16xf32> to vector<2x8x16xbf16>
    %110 = vector.extract_strided_slice %34 {offsets = [0, 48], sizes = [16, 16], strides = [1, 1]} : vector<16x64xf32> to vector<16x16xf32>
    %111 = vector.shape_cast %110 : vector<16x16xf32> to vector<2x8x16xf32>
    %112 = arith.truncf %111 : vector<2x8x16xf32> to vector<2x8x16xbf16>
    "tpu.trace_start"() <{level = 10 : i32, message = "bqd,bkd->bqk"}> : () -> ()
    %cst_28 = arith.constant dense<0.000000e+00> : vector<2x8x8xf32>
    %113 = tpu.matmul %106, %109, %cst_28 {dimension_numbers = #tpu.dot_dimension_numbers<[2], [2], [1], [1], [0, 0, 0, 1, 1, 1], [0], [0]>} : vector<2x8x16xbf16>, vector<2x8x16xbf16>, vector<2x8x8xf32> -> vector<2x8x8xf32>
    "tpu.trace_stop"() : () -> ()
    %cst_29 = arith.constant dense<0xFF800000> : vector<2x8xf32>
    %114 = vector.multi_reduction <maximumf>, %113, %cst_29 [2] : vector<2x8x8xf32> to vector<2x8xf32>
    %115 = vector.shape_cast %114 : vector<2x8xf32> to vector<2x8x1xf32>
    %116 = vector.broadcast %115 : vector<2x8x1xf32> to vector<2x8x8xf32>
    %117 = arith.subf %113, %116 : vector<2x8x8xf32>
    %118 = math.exp %117 : vector<2x8x8xf32>
    %cst_30 = arith.constant dense<0.000000e+00> : vector<2x8xf32>
    %119 = vector.multi_reduction <add>, %118, %cst_30 [2] : vector<2x8x8xf32> to vector<2x8xf32>
    %120 = vector.shape_cast %119 : vector<2x8xf32> to vector<2x8x1xf32>
    %121 = tpu.reciprocal %120 {approx = true} : vector<2x8x1xf32> -> vector<2x8x1xf32>
    %122 = vector.broadcast %121 : vector<2x8x1xf32> to vector<2x8x8xf32>
    %123 = arith.mulf %118, %122 : vector<2x8x8xf32>
    %124 = arith.truncf %123 : vector<2x8x8xf32> to vector<2x8x8xbf16>
    "tpu.trace_start"() <{level = 10 : i32, message = "bqk,bkd->bqd"}> : () -> ()
    %cst_31 = arith.constant dense<0.000000e+00> : vector<2x8x16xf32>
    %125 = tpu.matmul %124, %112, %cst_31 {dimension_numbers = #tpu.dot_dimension_numbers<[2], [1], [1], [2], [0, 0, 0, 1, 1, 2], [0], [0]>} : vector<2x8x8xbf16>, vector<2x8x16xbf16>, vector<2x8x16xf32> -> vector<2x8x16xf32>
    "tpu.trace_stop"() : () -> ()
    %126 = vector.shape_cast %125 : vector<2x8x16xf32> to vector<16x16xf32>
    %127 = tpu.concatenate %57, %80, %103, %126 in 1 : vector<16x16xf32>, vector<16x16xf32>, vector<16x16xf32>, vector<16x16xf32> -> vector<16x64xf32>
    %128 = arith.truncf %127 : vector<16x64xf32> to vector<16x64xbf16>
    %c0_32 = arith.constant 0 : index
    %c0_33 = arith.constant 0 : index
    %129 = vector.load %arg6[%c0_32, %c0_33] : memref<64x64xbf16, #tpu.memory_space<vmem>>, vector<64x64xbf16>
    %cst_34 = arith.constant dense<0.000000e+00> : vector<16x64xf32>
    %130 = tpu.matmul %128, %129, %cst_34 {dimension_numbers = #tpu.dot_dimension_numbers<[1], [0], [0], [1], [0, 0, 1, 1], [], []>} : vector<16x64xbf16>, vector<64x64xbf16>, vector<16x64xf32> -> vector<16x64xf32>
    %c0_35 = arith.constant 0 : index
    %c0_36 = arith.constant 0 : index
    %131 = vector.load %arg7[%c0_35, %c0_36] : memref<1x64xf32, #tpu.memory_space<vmem>>, vector<1x64xf32>
    %132 = vector.broadcast %131 : vector<1x64xf32> to vector<16x64xf32>
    %133 = arith.addf %130, %132 : vector<16x64xf32>
    %c0_37 = arith.constant 0 : index
    %c0_38 = arith.constant 0 : index
    %c0_39 = arith.constant 0 : index
    %134 = vector.load %arg1[%c0_37, %c0_38, %c0_39] : memref<2x8x64xf32, #tpu.memory_space<vmem>>, vector<2x8x64xf32>
    %135 = vector.shape_cast %134 : vector<2x8x64xf32> to vector<16x64xf32>
    %136 = arith.addf %135, %133 : vector<16x64xf32>
    %c0_40 = arith.constant 0 : index
    %c0_41 = arith.constant 0 : index
    %137 = vector.load %arg8[%c0_40, %c0_41] : memref<1x64xf32, #tpu.memory_space<vmem>>, vector<1x64xf32>
    %c0_42 = arith.constant 0 : index
    %c0_43 = arith.constant 0 : index
    %138 = vector.load %arg9[%c0_42, %c0_43] : memref<1x64xf32, #tpu.memory_space<vmem>>, vector<1x64xf32>
    %cst_44 = arith.constant dense<0.000000e+00> : vector<16xf32>
    %139 = vector.multi_reduction <add>, %136, %cst_44 [1] : vector<16x64xf32> to vector<16xf32>
    %140 = vector.shape_cast %139 : vector<16xf32> to vector<16x1xf32>
    %cst_45 = arith.constant 6.400000e+01 : f32
    %141 = vector.broadcast %cst_45 : f32 to vector<16x1xf32>
    %142 = arith.divf %140, %141 : vector<16x1xf32>
    %143 = vector.broadcast %142 : vector<16x1xf32> to vector<16x64xf32>
    %144 = arith.subf %136, %143 : vector<16x64xf32>
    %145 = arith.mulf %144, %144 : vector<16x64xf32>
    %cst_46 = arith.constant dense<0.000000e+00> : vector<16xf32>
    %146 = vector.multi_reduction <add>, %145, %cst_46 [1] : vector<16x64xf32> to vector<16xf32>
    %147 = vector.shape_cast %146 : vector<16xf32> to vector<16x1xf32>
    %cst_47 = arith.constant 6.400000e+01 : f32
    %148 = vector.broadcast %cst_47 : f32 to vector<16x1xf32>
    %149 = arith.divf %147, %148 : vector<16x1xf32>
    %cst_48 = arith.constant 9.99999974E-6 : f32
    %150 = vector.broadcast %cst_48 : f32 to vector<16x1xf32>
    %151 = arith.addf %149, %150 : vector<16x1xf32>
    %152 = math.rsqrt %151 : vector<16x1xf32>
    %153 = vector.broadcast %152 : vector<16x1xf32> to vector<16x64xf32>
    %154 = arith.mulf %144, %153 : vector<16x64xf32>
    %155 = vector.broadcast %137 : vector<1x64xf32> to vector<16x64xf32>
    %156 = arith.mulf %154, %155 : vector<16x64xf32>
    %157 = vector.broadcast %138 : vector<1x64xf32> to vector<16x64xf32>
    %158 = arith.addf %156, %157 : vector<16x64xf32>
    %159 = arith.truncf %158 : vector<16x64xf32> to vector<16x64xbf16>
    %c0_49 = arith.constant 0 : index
    %c0_50 = arith.constant 0 : index
    %160 = vector.load %arg10[%c0_49, %c0_50] : memref<64x256xbf16, #tpu.memory_space<vmem>>, vector<64x256xbf16>
    %cst_51 = arith.constant dense<0.000000e+00> : vector<16x256xf32>
    %161 = tpu.matmul %159, %160, %cst_51 {dimension_numbers = #tpu.dot_dimension_numbers<[1], [0], [0], [1], [0, 0, 1, 1], [], []>} : vector<16x64xbf16>, vector<64x256xbf16>, vector<16x256xf32> -> vector<16x256xf32>
    %c0_52 = arith.constant 0 : index
    %c0_53 = arith.constant 0 : index
    %162 = vector.load %arg11[%c0_52, %c0_53] : memref<1x256xf32, #tpu.memory_space<vmem>>, vector<1x256xf32>
    %163 = vector.broadcast %162 : vector<1x256xf32> to vector<16x256xf32>
    %164 = arith.addf %161, %163 : vector<16x256xf32>
    %cst_54 = arith.constant 0.000000e+00 : f32
    %165 = vector.broadcast %cst_54 : f32 to vector<16x256xf32>
    %166 = arith.cmpf ogt, %164, %165 : vector<16x256xf32>
    %cst_55 = arith.constant 3.000000e-01 : f32
    %167 = vector.broadcast %cst_55 : f32 to vector<16x256xf32>
    %168 = arith.mulf %167, %164 : vector<16x256xf32>
    %169 = arith.select %166, %164, %168 : vector<16x256xi1>, vector<16x256xf32>
    %170 = arith.truncf %169 : vector<16x256xf32> to vector<16x256xbf16>
    %c0_56 = arith.constant 0 : index
    %c0_57 = arith.constant 0 : index
    %171 = vector.load %arg12[%c0_56, %c0_57] : memref<256x64xbf16, #tpu.memory_space<vmem>>, vector<256x64xbf16>
    %cst_58 = arith.constant dense<0.000000e+00> : vector<16x64xf32>
    %172 = tpu.matmul %170, %171, %cst_58 {dimension_numbers = #tpu.dot_dimension_numbers<[1], [0], [0], [1], [0, 0, 1, 1], [], []>} : vector<16x256xbf16>, vector<256x64xbf16>, vector<16x64xf32> -> vector<16x64xf32>
    %c0_59 = arith.constant 0 : index
    %c0_60 = arith.constant 0 : index
    %173 = vector.load %arg13[%c0_59, %c0_60] : memref<1x64xf32, #tpu.memory_space<vmem>>, vector<1x64xf32>
    %174 = vector.broadcast %173 : vector<1x64xf32> to vector<16x64xf32>
    %175 = arith.addf %172, %174 : vector<16x64xf32>
    %176 = arith.addf %136, %175 : vector<16x64xf32>
    %177 = vector.shape_cast %176 : vector<16x64xf32> to vector<2x8x64xf32>
    %c0_61 = arith.constant 0 : index
    %c0_62 = arith.constant 0 : index
    %c0_63 = arith.constant 0 : index
    %178 = vector.load %arg14[%c0_61, %c0_62, %c0_63] : memref<2x8x64xf32, #tpu.memory_space<vmem>>, vector<2x8x64xf32>
    tpu.vector_store %arg14[%c0_61, %c0_62, %c0_63], %177 {strides = array<i32>} : memref<2x8x64xf32, #tpu.memory_space<vmem>>, vector<2x8x64xf32>,
    return
  }
  func.func @transform_0(%arg0: i32) -> (i32, i32, i32) {
    %c0_i32 = arith.constant 0 : i32
    %c0_i32_0 = arith.constant 0 : i32
    %c0_i32_1 = arith.constant 0 : i32
    return %arg0, %c0_i32, %c0_i32_0 : i32, i32, i32
  }
  func.func @transform_1(%arg0: i32) -> (i32, i32) {
    %c0_i32 = arith.constant 0 : i32
    %c0_i32_0 = arith.constant 0 : i32
    %c0_i32_1 = arith.constant 0 : i32
    return %c0_i32, %c0_i32_0 : i32, i32
  }
  func.func @transform_2(%arg0: i32) -> (i32, i32) {
    %c0_i32 = arith.constant 0 : i32
    %c0_i32_0 = arith.constant 0 : i32
    %c0_i32_1 = arith.constant 0 : i32
    return %c0_i32, %c0_i32_0 : i32, i32
  }
  func.func @transform_3(%arg0: i32) -> (i32, i32) {
    %c0_i32 = arith.constant 0 : i32
    %c0_i32_0 = arith.constant 0 : i32
    %c0_i32_1 = arith.constant 0 : i32
    return %c0_i32, %c0_i32_0 : i32, i32
  }
  func.func @transform_4(%arg0: i32) -> (i32, i32) {
    %c0_i32 = arith.constant 0 : i32
    %c0_i32_0 = arith.constant 0 : i32
    %c0_i32_1 = arith.constant 0 : i32
    return %c0_i32, %c0_i32_0 : i32, i32
  }
  func.func @transform_5(%arg0: i32) -> (i32, i32) {
    %c0_i32 = arith.constant 0 : i32
    %c0_i32_0 = arith.constant 0 : i32
    %c0_i32_1 = arith.constant 0 : i32
    return %c0_i32, %c0_i32_0 : i32, i32
  }
  func.func @transform_6(%arg0: i32) -> (i32, i32) {
    %c0_i32 = arith.constant 0 : i32
    %c0_i32_0 = arith.constant 0 : i32
    %c0_i32_1 = arith.constant 0 : i32
    return %c0_i32, %c0_i32_0 : i32, i32
  }
  func.func @transform_7(%arg0: i32) -> (i32, i32) {
    %c0_i32 = arith.constant 0 : i32
    %c0_i32_0 = arith.constant 0 : i32
    %c0_i32_1 = arith.constant 0 : i32
    return %c0_i32, %c0_i32_0 : i32, i32
  }
  func.func @transform_8(%arg0: i32) -> (i32, i32) {
    %c0_i32 = arith.constant 0 : i32
    %c0_i32_0 = arith.constant 0 : i32
    %c0_i32_1 = arith.constant 0 : i32
    return %c0_i32, %c0_i32_0 : i32, i32
  }
  func.func @transform_9(%arg0: i32) -> (i32, i32) {
    %c0_i32 = arith.constant 0 : i32
    %c0_i32_0 = arith.constant 0 : i32
    %c0_i32_1 = arith.constant 0 : i32
    return %c0_i32, %c0_i32_0 : i32, i32
  }
  func.func @transform_10(%arg0: i32) -> (i32, i32) {
    %c0_i32 = arith.constant 0 : i32
    %c0_i32_0 = arith.constant 0 : i32
    %c0_i32_1 = arith.constant 0 : i32
    return %c0_i32, %c0_i32_0 : i32, i32
  }
  func.func @transform_11(%arg0: i32) -> (i32, i32) {
    %c0_i32 = arith.constant 0 : i32
    %c0_i32_0 = arith.constant 0 : i32
    %c0_i32_1 = arith.constant 0 : i32
    return %c0_i32, %c0_i32_0 : i32, i32
  }
  func.func @transform_12(%arg0: i32) -> (i32, i32) {
    %c0_i32 = arith.constant 0 : i32
    %c0_i32_0 = arith.constant 0 : i32
    %c0_i32_1 = arith.constant 0 : i32
    return %c0_i32, %c0_i32_0 : i32, i32
  }
  func.func @transform_13(%arg0: i32) -> (i32, i32, i32) {
    %c0_i32 = arith.constant 0 : i32
    %c0_i32_0 = arith.constant 0 : i32
    %c0_i32_1 = arith.constant 0 : i32
    return %arg0, %c0_i32, %c0_i32_0 : i32, i32, i32
  }
}

</mosaic_0001>

<llo_original>
// kernel: sab_forward.1
$region0: #{sab_forward.1}
  #allocation0 [shape = 'u32[]', space=smem, size = 0x4, offset = 0x4, fixed_abs, tag = 'smem constant byte address 0x4 - core index']
  #allocation1 [shape = 'u32[72,128]{1,0:T(1,128)}', space=vmem, size = 0x9000, scoped, tag = 'internal scratch']
  %s0 = inlined_call_operand.vmem [shape: f32[4,8,64], index: 0, kind: input, shape index: {}]
  %s1 = inlined_call_operand.vmem [shape: f32[1,64], index: 1, kind: input, shape index: {}]
  %s2 = inlined_call_operand.vmem [shape: f32[1,64], index: 2, kind: input, shape index: {}]
  %s3 = inlined_call_operand.vmem [shape: bf16[64,192], index: 3, kind: input, shape index: {}]
  %s4 = inlined_call_operand.vmem [shape: f32[1,192], index: 4, kind: input, shape index: {}]
  %s5 = inlined_call_operand.vmem [shape: bf16[64,64], index: 5, kind: input, shape index: {}]
  %s6 = inlined_call_operand.vmem [shape: f32[1,64], index: 6, kind: input, shape index: {}]
  %s7 = inlined_call_operand.vmem [shape: f32[1,64], index: 7, kind: input, shape index: {}]
  %s8 = inlined_call_operand.vmem [shape: f32[1,64], index: 8, kind: input, shape index: {}]
  %s9 = inlined_call_operand.vmem [shape: bf16[64,256], index: 9, kind: input, shape index: {}]
  %s10 = inlined_call_operand.vmem [shape: f32[1,256], index: 10, kind: input, shape index: {}]
  %s11 = inlined_call_operand.vmem [shape: bf16[256,64], index: 11, kind: input, shape index: {}]
  %s12 = inlined_call_operand.vmem [shape: f32[1,64], index: 12, kind: input, shape index: {}]
  %s13 = inlined_call_operand.hbm [shape: f32[4,8,64], index: 13, kind: output, shape index: {}]
  %s14 = sld [smem:[#allocation0]]
  $region85: #{sab_forward.1} parent=0
    _
  %s16 = ssub.s32 1, %s14
  %s17 = scalar_select 0, %s16, %s14
  $region1: #{sab_forward.1} parent=0
    #allocation2 [shape = 'u8[16384]{0}', space=vmem, size = 0x4000, scoped, tag = 'output window, operand 0']
    #allocation3 [shape = 's32[2]{0}', space=sflag, size = 0x8, scoped, tag = 'scoped memory for sab_forward.1']
    %18 = vsyncpa [#allocation3], 0
    %s19 = scalar_lea.sflag [#allocation3], 1
    %20 = vsyncpa %s19, 0
    loop: start=0, step=1, limit=4
    $region2: #{sab_forward.1} parent=1 // loop_pre_header
      _
    $region3: #{sab_forward.1} parent=1 // loop_header
      %s22 = sphi 0, %s26
      %p23 = scmp.ge.s32.totalorder %s22, 4
      %s32 = sphi 0, %s34
      %s35 = sphi 0, %s32
      %s36 = sphi 0, %s35
      %s52 = sphi 0, %s36
      %s56 = sphi 0, %s56
      %s58 = sphi 0, %s56
      %s59 = sphi 0, %s58
      %s73 = sphi 0, %s59
      %s77 = sphi 0, %s77
      %s79 = sphi 0, %s77
      %s80 = sphi 0, %s79
      %s94 = sphi 0, %s80
      %s98 = sphi 0, %s98
      %s100 = sphi 0, %s98
      %s101 = sphi 0, %s100
      %s115 = sphi 0, %s101
      %s119 = sphi 0, %s119
      %s121 = sphi 0, %s119
      %s122 = sphi 0, %s121
      %s136 = sphi 0, %s122
      %s140 = sphi 0, %s140
      %s142 = sphi 0, %s140
      %s143 = sphi 0, %s142
      %s157 = sphi 0, %s143
      %s161 = sphi 0, %s161
      %s163 = sphi 0, %s161
      %s164 = sphi 0, %s163
      %s178 = sphi 0, %s164
      %s182 = sphi 0, %s182
      %s184 = sphi 0, %s182
      %s185 = sphi 0, %s184
      %s199 = sphi 0, %s185
      %s203 = sphi 0, %s203
      %s205 = sphi 0, %s203
      %s206 = sphi 0, %s205
      %s220 = sphi 0, %s206
      %s224 = sphi 0, %s224
      %s226 = sphi 0, %s224
      %s227 = sphi 0, %s226
      %s241 = sphi 0, %s227
      %s245 = sphi 0, %s245
      %s247 = sphi 0, %s245
      %s248 = sphi 0, %s247
      %s262 = sphi 0, %s248
      %s266 = sphi 0, %s266
      %s268 = sphi 0, %s266
      %s269 = sphi 0, %s268
      %s283 = sphi 0, %s269
      %s287 = sphi 0, %s287
      %s289 = sphi 0, %s287
      %s290 = sphi 0, %s289
      %s304 = sphi 0, %s290
      %s310 = sphi 0, %s312
      %s313 = sphi 0, %s310
      %s314 = sphi 0, %s313
      %s330 = sphi 0, %s314
    $region4: #{sab_forward.1} parent=1 // loop_header_branch
      %25 = sbr.rel (%p23) target = $region8
    $region5: #{sab_forward.1} parent=1 // loop_body
      %s27 = ssub.s32 %s22, 1
      %s28 = ssub.s32 %s22, 2
      %s29 = sadd.s32 %s22, 1
      %s30 = ssub.s32 %s22, %s29
      %p31 = scmp.eq.s32.totalorder %s30, 0
      %s33 = sadd.s32 %s32, 1
      %s34 = scalar_select %p31, %s32, %s33
      %p37 = pneg %p31
      %p38 = scmp.eq.s32.totalorder %s22, 1
      %p39 = por %p37, %p38
      %p40 = scmp.ne.s32.totalorder %s32, %s35
      %p41 = scmp.eq.s32.totalorder %s22, 0
      %p42 = por %p40, %p41
      %p43 = scmp.ne.s32.totalorder %s32, %s35
      %p44 = scmp.eq.s32.totalorder %s27, 1
      %p45 = por %p43, %p44
      %p46 = scmp.ne.s32.totalorder %s35, %s36
      %p47 = scmp.eq.s32.totalorder %s27, 0
      %p48 = por %p46, %p47
      %p49 = scmp.ne.s32.totalorder %s35, %s36
      %p50 = scmp.eq.s32.totalorder %s28, 1
      %p51 = por %p49, %p50
      %p53 = scmp.ne.s32.totalorder %s36, %s52
      %p54 = scmp.eq.s32.totalorder %s28, 0
      %p55 = por %p53, %p54
      %s57 = sadd.s32 %s56, 1
      %p60 = scmp.eq.s32.totalorder %s22, 1
      %p61 = scmp.ne.s32.totalorder %s56, %s58
      %p62 = scmp.eq.s32.totalorder %s22, 0
      %p63 = por %p61, %p62
      %p64 = scmp.ne.s32.totalorder %s56, %s58
      %p65 = scmp.eq.s32.totalorder %s27, 1
      %p66 = por %p64, %p65
      %p67 = scmp.ne.s32.totalorder %s58, %s59
      %p68 = scmp.eq.s32.totalorder %s27, 0
      %p69 = por %p67, %p68
      %p70 = scmp.ne.s32.totalorder %s58, %s59
      %p71 = scmp.eq.s32.totalorder %s28, 1
      %p72 = por %p70, %p71
      %p74 = scmp.ne.s32.totalorder %s59, %s73
      %p75 = scmp.eq.s32.totalorder %s28, 0
      %p76 = por %p74, %p75
      %s78 = sadd.s32 %s77, 1
      %p81 = scmp.eq.s32.totalorder %s22, 1
      %p82 = scmp.ne.s32.totalorder %s77, %s79
      %p83 = scmp.eq.s32.totalorder %s22, 0
      %p84 = por %p82, %p83
      %p85 = scmp.ne.s32.totalorder %s77, %s79
      %p86 = scmp.eq.s32.totalorder %s27, 1
      %p87 = por %p85, %p86
      %p88 = scmp.ne.s32.totalorder %s79, %s80
      %p89 = scmp.eq.s32.totalorder %s27, 0
      %p90 = por %p88, %p89
      %p91 = scmp.ne.s32.totalorder %s79, %s80
      %p92 = scmp.eq.s32.totalorder %s28, 1
      %p93 = por %p91, %p92
      %p95 = scmp.ne.s32.totalorder %s80, %s94
      %p96 = scmp.eq.s32.totalorder %s28, 0
      %p97 = por %p95, %p96
      %s99 = sadd.s32 %s98, 1
      %p102 = scmp.eq.s32.totalorder %s22, 1
      %p103 = scmp.ne.s32.totalorder %s98, %s100
      %p104 = scmp.eq.s32.totalorder %s22, 0
      %p105 = por %p103, %p104
      %p106 = scmp.ne.s32.totalorder %s98, %s100
      %p107 = scmp.eq.s32.totalorder %s27, 1
      %p108 = por %p106, %p107
      %p109 = scmp.ne.s32.totalorder %s100, %s101
      %p110 = scmp.eq.s32.totalorder %s27, 0
      %p111 = por %p109, %p110
      %p112 = scmp.ne.s32.totalorder %s100, %s101
      %p113 = scmp.eq.s32.totalorder %s28, 1
      %p114 = por %p112, %p113
      %p116 = scmp.ne.s32.totalorder %s101, %s115
      %p117 = scmp.eq.s32.totalorder %s28, 0
      %p118 = por %p116, %p117
      %s120 = sadd.s32 %s119, 1
      %p123 = scmp.eq.s32.totalorder %s22, 1
      %p124 = scmp.ne.s32.totalorder %s119, %s121
      %p125 = scmp.eq.s32.totalorder %s22, 0
      %p126 = por %p124, %p125
      %p127 = scmp.ne.s32.totalorder %s119, %s121
      %p128 = scmp.eq.s32.totalorder %s27, 1
      %p129 = por %p127, %p128
      %p130 = scmp.ne.s32.totalorder %s121, %s122
      %p131 = scmp.eq.s32.totalorder %s27, 0
      %p132 = por %p130, %p131
      %p133 = scmp.ne.s32.totalorder %s121, %s122
      %p134 = scmp.eq.s32.totalorder %s28, 1
      %p135 = por %p133, %p134
      %p137 = scmp.ne.s32.totalorder %s122, %s136
      %p138 = scmp.eq.s32.totalorder %s28, 0
      %p139 = por %p137, %p138
      %s141 = sadd.s32 %s140, 1
      %p144 = scmp.eq.s32.totalorder %s22, 1
      %p145 = scmp.ne.s32.totalorder %s140, %s142
      %p146 = scmp.eq.s32.totalorder %s22, 0
      %p147 = por %p145, %p146
      %p148 = scmp.ne.s32.totalorder %s140, %s142
      %p149 = scmp.eq.s32.totalorder %s27, 1
      %p150 = por %p148, %p149
      %p151 = scmp.ne.s32.totalorder %s142, %s143
      %p152 = scmp.eq.s32.totalorder %s27, 0
      %p153 = por %p151, %p152
      %p154 = scmp.ne.s32.totalorder %s142, %s143
      %p155 = scmp.eq.s32.totalorder %s28, 1
      %p156 = por %p154, %p155
      %p158 = scmp.ne.s32.totalorder %s143, %s157
      %p159 = scmp.eq.s32.totalorder %s28, 0
      %p160 = por %p158, %p159
      %s162 = sadd.s32 %s161, 1
      %p165 = scmp.eq.s32.totalorder %s22, 1
      %p166 = scmp.ne.s32.totalorder %s161, %s163
      %p167 = scmp.eq.s32.totalorder %s22, 0
      %p168 = por %p166, %p167
      %p169 = scmp.ne.s32.totalorder %s161, %s163
      %p170 = scmp.eq.s32.totalorder %s27, 1
      %p171 = por %p169, %p170
      %p172 = scmp.ne.s32.totalorder %s163, %s164
      %p173 = scmp.eq.s32.totalorder %s27, 0
      %p174 = por %p172, %p173
      %p175 = scmp.ne.s32.totalorder %s163, %s164
      %p176 = scmp.eq.s32.totalorder %s28, 1
      %p177 = por %p175, %p176
      %p179 = scmp.ne.s32.totalorder %s164, %s178
      %p180 = scmp.eq.s32.totalorder %s28, 0
      %p181 = por %p179, %p180
      %s183 = sadd.s32 %s182, 1
      %p186 = scmp.eq.s32.totalorder %s22, 1
      %p187 = scmp.ne.s32.totalorder %s182, %s184
      %p188 = scmp.eq.s32.totalorder %s22, 0
      %p189 = por %p187, %p188
      %p190 = scmp.ne.s32.totalorder %s182, %s184
      %p191 = scmp.eq.s32.totalorder %s27, 1
      %p192 = por %p190, %p191
      %p193 = scmp.ne.s32.totalorder %s184, %s185
      %p194 = scmp.eq.s32.totalorder %s27, 0
      %p195 = por %p193, %p194
      %p196 = scmp.ne.s32.totalorder %s184, %s185
      %p197 = scmp.eq.s32.totalorder %s28, 1
      %p198 = por %p196, %p197
      %p200 = scmp.ne.s32.totalorder %s185, %s199
      %p201 = scmp.eq.s32.totalorder %s28, 0
      %p202 = por %p200, %p201
      %s204 = sadd.s32 %s203, 1
      %p207 = scmp.eq.s32.totalorder %s22, 1
      %p208 = scmp.ne.s32.totalorder %s203, %s205
      %p209 = scmp.eq.s32.totalorder %s22, 0
      %p210 = por %p208, %p209
      %p211 = scmp.ne.s32.totalorder %s203, %s205
      %p212 = scmp.eq.s32.totalorder %s27, 1
      %p213 = por %p211, %p212
      %p214 = scmp.ne.s32.totalorder %s205, %s206
      %p215 = scmp.eq.s32.totalorder %s27, 0
      %p216 = por %p214, %p215
      %p217 = scmp.ne.s32.totalorder %s205, %s206
      %p218 = scmp.eq.s32.totalorder %s28, 1
      %p219 = por %p217, %p218
      %p221 = scmp.ne.s32.totalorder %s206, %s220
      %p222 = scmp.eq.s32.totalorder %s28, 0
      %p223 = por %p221, %p222
      %s225 = sadd.s32 %s224, 1
      %p228 = scmp.eq.s32.totalorder %s22, 1
      %p229 = scmp.ne.s32.totalorder %s224, %s226
      %p230 = scmp.eq.s32.totalorder %s22, 0
      %p231 = por %p229, %p230
      %p232 = scmp.ne.s32.totalorder %s224, %s226
      %p233 = scmp.eq.s32.totalorder %s27, 1
      %p234 = por %p232, %p233
      %p235 = scmp.ne.s32.totalorder %s226, %s227
      %p236 = scmp.eq.s32.totalorder %s27, 0
      %p237 = por %p235, %p236
      %p238 = scmp.ne.s32.totalorder %s226, %s227
      %p239 = scmp.eq.s32.totalorder %s28, 1
      %p240 = por %p238, %p239
      %p242 = scmp.ne.s32.totalorder %s227, %s241
      %p243 = scmp.eq.s32.totalorder %s28, 0
      %p244 = por %p242, %p243
      %s246 = sadd.s32 %s245, 1
      %p249 = scmp.eq.s32.totalorder %s22, 1
      %p250 = scmp.ne.s32.totalorder %s245, %s247
      %p251 = scmp.eq.s32.totalorder %s22, 0
      %p252 = por %p250, %p251
      %p253 = scmp.ne.s32.totalorder %s245, %s247
      %p254 = scmp.eq.s32.totalorder %s27, 1
      %p255 = por %p253, %p254
      %p256 = scmp.ne.s32.totalorder %s247, %s248
      %p257 = scmp.eq.s32.totalorder %s27, 0
      %p258 = por %p256, %p257
      %p259 = scmp.ne.s32.totalorder %s247, %s248
      %p260 = scmp.eq.s32.totalorder %s28, 1
      %p261 = por %p259, %p260
      %p263 = scmp.ne.s32.totalorder %s248, %s262
      %p264 = scmp.eq.s32.totalorder %s28, 0
      %p265 = por %p263, %p264
      %s267 = sadd.s32 %s266, 1
      %p270 = scmp.eq.s32.totalorder %s22, 1
      %p271 = scmp.ne.s32.totalorder %s266, %s268
      %p272 = scmp.eq.s32.totalorder %s22, 0
      %p273 = por %p271, %p272
      %p274 = scmp.ne.s32.totalorder %s266, %s268
      %p275 = scmp.eq.s32.totalorder %s27, 1
      %p276 = por %p274, %p275
      %p277 = scmp.ne.s32.totalorder %s268, %s269
      %p278 = scmp.eq.s32.totalorder %s27, 0
      %p279 = por %p277, %p278
      %p280 = scmp.ne.s32.totalorder %s268, %s269
      %p281 = scmp.eq.s32.totalorder %s28, 1
      %p282 = por %p280, %p281
      %p284 = scmp.ne.s32.totalorder %s269, %s283
      %p285 = scmp.eq.s32.totalorder %s28, 0
      %p286 = por %p284, %p285
      %s288 = sadd.s32 %s287, 1
      %p291 = scmp.eq.s32.totalorder %s22, 1
      %p292 = scmp.ne.s32.totalorder %s287, %s289
      %p293 = scmp.eq.s32.totalorder %s22, 0
      %p294 = por %p292, %p293
      %p295 = scmp.ne.s32.totalorder %s287, %s289
      %p296 = scmp.eq.s32.totalorder %s27, 1
      %p297 = por %p295, %p296
      %p298 = scmp.ne.s32.totalorder %s289, %s290
      %p299 = scmp.eq.s32.totalorder %s27, 0
      %p300 = por %p298, %p299
      %p301 = scmp.ne.s32.totalorder %s289, %s290
      %p302 = scmp.eq.s32.totalorder %s28, 1
      %p303 = por %p301, %p302
      %p305 = scmp.ne.s32.totalorder %s290, %s304
      %p306 = scmp.eq.s32.totalorder %s28, 0
      %p307 = por %p305, %p306
      %s308 = ssub.s32 %s22, %s29
      %p309 = scmp.eq.s32.totalorder %s308, 0
      %s311 = sadd.s32 %s310, 1
      %s312 = scalar_select %p309, %s310, %s311
      %p315 = pneg %p309
      %p316 = scmp.eq.s32.totalorder %s22, 1
      %p317 = por %p315, %p316
      %p318 = scmp.ne.s32.totalorder %s310, %s313
      %p319 = scmp.eq.s32.totalorder %s22, 0
      %p320 = por %p318, %p319
      %p321 = scmp.ne.s32.totalorder %s310, %s313
      %p322 = scmp.eq.s32.totalorder %s27, 1
      %p323 = por %p321, %p322
      %p324 = scmp.ne.s32.totalorder %s313, %s314
      %p325 = scmp.eq.s32.totalorder %s27, 0
      %p326 = por %p324, %p325
      %p327 = scmp.ne.s32.totalorder %s313, %s314
      %p328 = scmp.eq.s32.totalorder %s28, 1
      %p329 = por %p327, %p328
      %p331 = scmp.ne.s32.totalorder %s314, %s330
      %p332 = scmp.eq.s32.totalorder %s28, 0
      %p333 = por %p331, %p332
      %p334 = scmp.le.s32.totalorder 1, %s22
      %p335 = scmp.lt.s32.totalorder %s22, 3
      %p336 = pnand %p334, %p335
      %p337 = pneg %p336
      // Predicated region
      $region9: #{sab_forward.1} parent=5 // pred_check
        _
      $region10: #{sab_forward.1} parent=5 // pred_check_branch
        %339 = sbr.rel (%p336) target = $region12
      $region11: #{sab_forward.1} parent=5 // pred_region
        %s340 = ssub.s32 %s22, 1
        // Predicated region
        $region13: #{sab_forward.1} parent=11 // pred_check
          %p341 = pneg %p69
        $region14: #{sab_forward.1} parent=11 // pred_check_branch
          %343 = sbr.rel (%p341) target = $region16
        $region15: #{sab_forward.1} parent=11 // pred_region
          _
        $region16: #{sab_forward.1} parent=11 // pred_fallthru
          _
        // Predicated region
        $region17: #{sab_forward.1} parent=11 // pred_check
          %p344 = pneg %p90
        $region18: #{sab_forward.1} parent=11 // pred_check_branch
          %346 = sbr.rel (%p344) target = $region20
        $region19: #{sab_forward.1} parent=11 // pred_region
          _
        $region20: #{sab_forward.1} parent=11 // pred_fallthru
          _
        // Predicated region
        $region21: #{sab_forward.1} parent=11 // pred_check
          %p347 = pneg %p111
        $region22: #{sab_forward.1} parent=11 // pred_check_branch
          %349 = sbr.rel (%p347) target = $region24
        $region23: #{sab_forward.1} parent=11 // pred_region
          _
        $region24: #{sab_forward.1} parent=11 // pred_fallthru
          _
        // Predicated region
        $region25: #{sab_forward.1} parent=11 // pred_check
          %p350 = pneg %p132
        $region26: #{sab_forward.1} parent=11 // pred_check_branch
          %352 = sbr.rel (%p350) target = $region28
        $region27: #{sab_forward.1} parent=11 // pred_region
          _
        $region28: #{sab_forward.1} parent=11 // pred_fallthru
          _
        // Predicated region
        $region29: #{sab_forward.1} parent=11 // pred_check
          %p353 = pneg %p153
        $region30: #{sab_forward.1} parent=11 // pred_check_branch
          %355 = sbr.rel (%p353) target = $region32
        $region31: #{sab_forward.1} parent=11 // pred_region
          _
        $region32: #{sab_forward.1} parent=11 // pred_fallthru
          _
        // Predicated region
        $region33: #{sab_forward.1} parent=11 // pred_check
          %p356 = pneg %p174
        $region34: #{sab_forward.1} parent=11 // pred_check_branch
          %358 = sbr.rel (%p356) target = $region36
        $region35: #{sab_forward.1} parent=11 // pred_region
          _
        $region36: #{sab_forward.1} parent=11 // pred_fallthru
          _
        // Predicated region
        $region37: #{sab_forward.1} parent=11 // pred_check
          %p359 = pneg %p195
        $region38: #{sab_forward.1} parent=11 // pred_check_branch
          %361 = sbr.rel (%p359) target = $region40
        $region39: #{sab_forward.1} parent=11 // pred_region
          _
        $region40: #{sab_forward.1} parent=11 // pred_fallthru
          _
        // Predicated region
        $region41: #{sab_forward.1} parent=11 // pred_check
          %p362 = pneg %p216
        $region42: #{sab_forward.1} parent=11 // pred_check_branch
          %364 = sbr.rel (%p362) target = $region44
        $region43: #{sab_forward.1} parent=11 // pred_region
          _
        $region44: #{sab_forward.1} parent=11 // pred_fallthru
          _
        // Predicated region
        $region45: #{sab_forward.1} parent=11 // pred_check
          %p365 = pneg %p237
        $region46: #{sab_forward.1} parent=11 // pred_check_branch
          %367 = sbr.rel (%p365) target = $region48
        $region47: #{sab_forward.1} parent=11 // pred_region
          _
        $region48: #{sab_forward.1} parent=11 // pred_fallthru
          _
        // Predicated region
        $region49: #{sab_forward.1} parent=11 // pred_check
          %p368 = pneg %p258
        $region50: #{sab_forward.1} parent=11 // pred_check_branch
          %370 = sbr.rel (%p368) target = $region52
        $region51: #{sab_forward.1} parent=11 // pred_region
          _
        $region52: #{sab_forward.1} parent=11 // pred_fallthru
          _
        // Predicated region
        $region53: #{sab_forward.1} parent=11 // pred_check
          %p371 = pneg %p279
        $region54: #{sab_forward.1} parent=11 // pred_check_branch
          %373 = sbr.rel (%p371) target = $region56
        $region55: #{sab_forward.1} parent=11 // pred_region
          _
        $region56: #{sab_forward.1} parent=11 // pred_fallthru
          _
        // Predicated region
        $region57: #{sab_forward.1} parent=11 // pred_check
          %p374 = pneg %p300
        $region58: #{sab_forward.1} parent=11 // pred_check_branch
          %376 = sbr.rel (%p374) target = $region60
        $region59: #{sab_forward.1} parent=11 // pred_region
          _
        $region60: #{sab_forward.1} parent=11 // pred_fallthru
          _
      $region12: #{sab_forward.1} parent=5 // pred_fallthru
        _
      %p377 = scmp.lt.s32.totalorder %s22, 2
      // Predicated region
      $region61: #{sab_forward.1} parent=5 // pred_check
        %p378 = pneg %p377
      $region62: #{sab_forward.1} parent=5 // pred_check_branch
        %380 = sbr.rel (%p378) target = $region64
      $region63: #{sab_forward.1} parent=5 // pred_region
        // Predicated region
        $region65: #{sab_forward.1} parent=63 // pred_check
          %p381 = pneg %p42
        $region66: #{sab_forward.1} parent=63 // pred_check_branch
          %383 = sbr.rel (%p381) target = $region68
        $region67: #{sab_forward.1} parent=63 // pred_region
          %s384 = smul.u32 2, %s22
          %p385 = scmp.lt.s32.totalorder %s384, 3
          %s386 = scalar_select %p385, %s384, 3
          %s387 = smul.addr %s386, 8
          %s388 = scalar_lea.vmem %s0, %s387
          %s389 = smul.u32 2, %s22
        $region68: #{sab_forward.1} parent=63 // pred_fallthru
          _
      $region64: #{sab_forward.1} parent=5 // pred_fallthru
        _
      %p390 = scmp.le.s32.totalorder 1, %s22
      %p391 = scmp.lt.s32.totalorder %s22, 3
      %p392 = pnand %p390, %p391
      %p393 = pneg %p392
      // Predicated region
      $region69: #{sab_forward.1} parent=5 // pred_check
        _
      $region70: #{sab_forward.1} parent=5 // pred_check_branch
        %395 = sbr.rel (%p392) target = $region72
      $region71: #{sab_forward.1} parent=5 // pred_region
        %s396 = ssub.s32 %s22, 1
        %s397 = smul.u32 2, %s27
        %p398 = scmp.lt.s32.totalorder %s397, 3
        %s399 = scalar_select %p398, %s397, 3
        %s400 = smul.addr %s399, 8
        %s401 = scalar_lea.vmem %s0, %s400
        %p402 = pneg %p48
        %p403 = pneg %p45
        %p404 = pneg %p69
        %p405 = pneg %p66
        %p406 = pneg %p90
        %p407 = pneg %p87
        %p408 = pneg %p111
        %p409 = pneg %p108
        %p410 = pneg %p132
        %p411 = pneg %p129
        %p412 = pneg %p153
        %p413 = pneg %p150
        %p414 = pneg %p174
        %p415 = pneg %p171
        %p416 = pneg %p195
        %p417 = pneg %p192
        %p418 = pneg %p216
        %p419 = pneg %p213
        %p420 = pneg %p237
        %p421 = pneg %p234
        %p422 = pneg %p258
        %p423 = pneg %p255
        %p424 = pneg %p279
        %p425 = pneg %p276
        %p426 = pneg %p300
        %p427 = pneg %p297
        %p428 = pneg %p326
        %p429 = pneg %p323
        %s430 = sand.u32 %s313, 1
        %s431 = scalar_lea.sflag [#allocation3], %s430
        %s432 = sand.u32 %s313, 1
        %s433 = smul.addr %s432, 16
        %s434 = scalar_lea.vmem [#allocation2], %s433
        %s435 = smul.u32 2, %s27
        %p436 = scmp.lt.s32.totalorder %s435, 3
        %s437 = scalar_select %p436, %s435, 3
        %s438 = smul.addr %s437, 8
        %s439 = scalar_lea.vmem %s0, %s438
        %s440 = smul.u32 2, %s27
        %s441 = smul.u32 2, %s27
        %v443 = vld [vmem:[%s439] sm:$0xff]
        %v444 = vld [vmem:[%s439 + $0x8] sm:$0xff]
        %v445 = vld [vmem:[%s1] sm:$0x1]
        %v446 = vld [vmem:[%s2] sm:$0x1]
        %vm447 = vcmask 523264
        %v448 = vsel %vm447, %v443, 0.0
        %449 = vadd.xlane.f32.xlu0 %v448
        %v450 = vpop.xlane.xlu0 %449
        %v451 = vsel %vm447, %v444, 0.0
        %452 = vadd.xlane.f32.xlu0 %v451
        %v453 = vpop.xlane.xlu0 %452
        %v454 = vrcp.pop 64.0
        %v455 = vmul.f32 64.0, %v454
        %v456 = vsub.f32 1.0, %v455
        %v457 = vmul.f32 %v454, %v456
        %v458 = vadd.f32 %v454, %v457
        %vm459 = vweird.f32 %v454
        %v460 = vsel %vm459, %v454, %v458
        %v461 = vmul.f32 %v450, %v460
        %v462 = vmul.f32 %v453, %v460
        %v463 = vsub.f32 %v443, %v461
        %v464 = vsub.f32 %v444, %v462
        %v465 = vmul.f32 %v463, %v463
        %v466 = vmul.f32 %v464, %v464
        %v467 = vsel %vm447, %v465, 0.0
        %468 = vadd.xlane.f32.xlu0 %v467
        %v469 = vpop.xlane.xlu0 %468
        %v470 = vsel %vm447, %v466, 0.0
        %471 = vadd.xlane.f32.xlu0 %v470
        %v472 = vpop.xlane.xlu0 %471
        %v473 = vmul.f32 %v469, %v460
        %v474 = vmul.f32 %v472, %v460
        %v475 = vadd.f32 %v473, 1e-05
        %v476 = vadd.f32 %v474, 1e-05
        %v477 = vrsqrt.pop %v475
        %v478 = vmul.f32 %v477, %v475
        %v479 = vmul.f32 %v478, %v477
        %v480 = vmul.f32 0.5, %v479
        %v481 = vsub.f32 1.5, %v480
        %v482 = vmul.f32 %v477, %v481
        %vm483 = vweird.f32 %v475
        %vm484 = vweird.f32 %v477
        %vm485 = vmor %vm483, %vm484
        %v486 = vsel %vm485, %v477, %v482
        %v487 = vrsqrt.pop %v476
        %v488 = vmul.f32 %v487, %v476
        %v489 = vmul.f32 %v488, %v487
        %v490 = vmul.f32 0.5, %v489
        %v491 = vsub.f32 1.5, %v490
        %v492 = vmul.f32 %v487, %v491
        %vm493 = vweird.f32 %v476
        %vm494 = vweird.f32 %v487
        %vm495 = vmor %vm493, %vm494
        %v496 = vsel %vm495, %v487, %v492
        %v497 = vmul.f32 %v463, %v486
        %v498 = vmul.f32 %v464, %v496
        %v500 = vperm.slane %v445, 0
        %v502 = vmul.f32 %v497, %v500
        %v503 = vmul.f32 %v498, %v500
        %v505 = vperm.slane %v446, 0
        %v507 = vadd.f32 %v502, %v505
        %v508 = vadd.f32 %v503, %v505
        %v509 = vpack.c.bf16 %v508, %v507
        %v510 = vld [vmem:[%s3] sm:$0xff]
        %v511 = vld [vmem:[%s3 + $0x8] sm:$0xff]
        %v512 = vld [vmem:[%s3 + $0x10] sm:$0xff]
        %v513 = vld [vmem:[%s3 + $0x18] sm:$0xff]
        %v514 = vld [vmem:[%s3 + $0x20] sm:$0xff]
        %v515 = vld [vmem:[%s3 + $0x28] sm:$0xff]
        %v516 = vld [vmem:[%s3 + $0x30] sm:$0xff]
        %v517 = vld [vmem:[%s3 + $0x38] sm:$0xff]
        %v518 = vld [vmem:[%s4] sm:$0x3]
        %v520 = vperm.slane %v518, 0
        %v521 = vperm.slane %v518, 1
        %v532 = vunpack.c.l.b16 %v510
        %v533 = vunpack.c.h.b16 %v510
        %v534 = vunpack.c.l.b16 %v511
        %v535 = vunpack.c.h.b16 %v511
        %v536 = vunpack.c.l.b16 %v512
        %v537 = vunpack.c.h.b16 %v512
        %v538 = vunpack.c.l.b16 %v513
        %v539 = vunpack.c.h.b16 %v513
        %v540 = vunpack.c.l.b16 %v514
        %v541 = vunpack.c.h.b16 %v514
        %v542 = vunpack.c.l.b16 %v515
        %v543 = vunpack.c.h.b16 %v515
        %v544 = vunpack.c.l.b16 %v516
        %v545 = vunpack.c.h.b16 %v516
        %v546 = vunpack.c.l.b16 %v517
        %v547 = vunpack.c.h.b16 %v517
        %v548 = vpack.c.b16 %v534, %v532
        %v549 = vpack.c.b16 %v535, %v533
        %v550 = vpack.c.b16 %v538, %v536
        %v551 = vpack.c.b16 %v539, %v537
        %v552 = vpack.c.b16 %v542, %v540
        %v553 = vpack.c.b16 %v543, %v541
        %v554 = vpack.c.b16 %v546, %v544
        %v555 = vpack.c.b16 %v547, %v545
        %v565 = vsel %vm447, %v509, 0
        %567 = vmatpush.bf16.msra.mxu0 0
        %568 = vmatpush.bf16.msra.mxu0 0
        %569 = vmatpush.bf16.msra.mxu0 0
        %570 = vmatpush.bf16.msra.mxu0 0
        %571 = vmatpush.bf16.msra.mxu0 %v554
        %572 = vmatpush.bf16.msra.mxu0 %v552
        %573 = vmatpush.bf16.msra.mxu0 %v550
        %574 = vmatpush.bf16.msra.mxu0 %v548
        %575 = vmatmul.bf16.gmra.mxu0 %v565
        %v576 = vpop.f32.mrf.mxu0
        %v577 = vadd.f32 %v520, %v576
        %v578 = vpop.f32.mrf.mxu0
        %v579 = vadd.f32 %v520, %v578
        %580 = vdwg.mxu0
        %581 = vmatpush.bf16.msra.mxu0 0
        %582 = vmatpush.bf16.msra.mxu0 0
        %583 = vmatpush.bf16.msra.mxu0 0
        %584 = vmatpush.bf16.msra.mxu0 0
        %585 = vmatpush.bf16.msra.mxu0 %v555
        %586 = vmatpush.bf16.msra.mxu0 %v553
        %587 = vmatpush.bf16.msra.mxu0 %v551
        %588 = vmatpush.bf16.msra.mxu0 %v549
        %589 = vmatmul.bf16.gmra.mxu0 %v565
        %v590 = vpop.f32.mrf.mxu0
        %v591 = vadd.f32 %v521, %v590
        %v592 = vpop.f32.mrf.mxu0
        %v593 = vadd.f32 %v521, %v592
        %594 = vdwg.mxu0
        %v595 = vmul.f32 %v577, 0.25
        %v596 = vmul.f32 %v579, 0.25
        %v597 = vpack.c.bf16 %v595, %v595
        %v598 = vpack.c.bf16 %v596, %v596
        %v599 = vpack.c.bf16 %v577, %v577
        %v600 = vpack.c.bf16 %v579, %v579
        %v601 = vpack.c.bf16 %v591, %v591
        %v602 = vpack.c.bf16 %v593, %v593
        %v604 = vunpack.c.l.b16 %v599
        %v605 = vpack.c.b16 %v604, %v604
        %606 = vrot.lane.b32.xlu0 %v605, 64
        %v607 = vpop.permute.xlu0 %606
        %vm608 = vcmask 130048
        %v610 = vsel %vm608, %v597, 0
        %v613 = vsel %vm608, %v607, 0
        %615 = vmatpush.bf16.xpose.msra.mxu0 0
        %616 = vmatpush.bf16.xpose.msra.mxu0 0
        %617 = vmatpush.bf16.xpose.msra.mxu0 0
        %618 = vmatpush.bf16.xpose.msra.mxu0 0
        %619 = vmatpush.bf16.xpose.msra.mxu0 0
        %620 = vmatpush.bf16.xpose.msra.mxu0 0
        %621 = vmatpush.bf16.xpose.msra.mxu0 0
        %622 = vmatpush.bf16.xpose.msra.mxu0 %v613
        %623 = vmatmul.bf16.gmra.mxu0 %v610
        %v624 = vpop.f32.mrf.mxu0
        %v625 = vadd.f32 0.0, %v624
        %v626 = vpop.f32.mrf.mxu0
        %627 = vdwg.mxu0
        %v629 = vunpack.c.l.b16 %v600
        %v630 = vpack.c.b16 %v629, %v629
        %631 = vrot.lane.b32.xlu0 %v630, 64
        %v632 = vpop.permute.xlu0 %631
        %v634 = vsel %vm608, %v598, 0
        %v637 = vsel %vm608, %v632, 0
        %639 = vmatpush.bf16.xpose.msra.mxu0 0
        %640 = vmatpush.bf16.xpose.msra.mxu0 0
        %641 = vmatpush.bf16.xpose.msra.mxu0 0
        %642 = vmatpush.bf16.xpose.msra.mxu0 0
        %643 = vmatpush.bf16.xpose.msra.mxu0 0
        %644 = vmatpush.bf16.xpose.msra.mxu0 0
        %645 = vmatpush.bf16.xpose.msra.mxu0 0
        %646 = vmatpush.bf16.xpose.msra.mxu0 %v637
        %647 = vmatmul.bf16.gmra.mxu0 %v634
        %v648 = vpop.f32.mrf.mxu0
        %v649 = vadd.f32 0.0, %v648
        %v650 = vpop.f32.mrf.mxu0
        %651 = vdwg.mxu0
        %vm652 = vcmask 64512
        %v653 = vsel %vm652, %v625, -inf
        %654 = vmax.xlane.f32.xlu0 %v653
        %v655 = vpop.xlane.xlu0 %654
        %v656 = vsel %vm652, %v649, -inf
        %657 = vmax.xlane.f32.xlu0 %v656
        %v658 = vpop.xlane.xlu0 %657
        %v659 = vsub.f32 %v625, %v655
        %v660 = vsub.f32 %v649, %v658
        %v661 = vmul.f32 %v659, 1.442695
        %v662 = vpow.pop %v661
        %v663 = vmul.f32 %v660, 1.442695
        %v664 = vpow.pop %v663
        %v665 = vsel %vm652, %v662, 0.0
        %666 = vadd.xlane.f32.xlu0 %v665
        %v667 = vpop.xlane.xlu0 %666
        %v668 = vsel %vm652, %v664, 0.0
        %669 = vadd.xlane.f32.xlu0 %v668
        %v670 = vpop.xlane.xlu0 %669
        %v671 = vrcp.pop %v667
        %v672 = vrcp.pop %v670
        %v673 = vmul.f32 %v662, %v671
        %v674 = vmul.f32 %v664, %v672
        %v675 = vpack.c.bf16 %v673, %v673
        %v676 = vpack.c.bf16 %v674, %v674
        %v678 = vsel %vm652, %v675, 0
        %vm680 = vcmask 1043456
        %v682 = vsel %vm680, %v601, 0
        %684 = vmatpush.bf16.msra.mxu0 0
        %685 = vmatpush.bf16.msra.mxu0 0
        %686 = vmatpush.bf16.msra.mxu0 0
        %687 = vmatpush.bf16.msra.mxu0 0
        %688 = vmatpush.bf16.msra.mxu0 0
        %689 = vmatpush.bf16.msra.mxu0 0
        %690 = vmatpush.bf16.msra.mxu0 0
        %691 = vmatpush.bf16.msra.mxu0 %v682
        %692 = vmatmul.bf16.gmra.mxu0 %v678
        %v693 = vpop.f32.mrf.mxu0
        %v694 = vadd.f32 0.0, %v693
        %v695 = vpop.f32.mrf.mxu0
        %696 = vdwg.mxu0
        %v698 = vsel %vm652, %v676, 0
        %v701 = vsel %vm680, %v602, 0
        %703 = vmatpush.bf16.msra.mxu0 0
        %704 = vmatpush.bf16.msra.mxu0 0
        %705 = vmatpush.bf16.msra.mxu0 0
        %706 = vmatpush.bf16.msra.mxu0 0
        %707 = vmatpush.bf16.msra.mxu0 0
        %708 = vmatpush.bf16.msra.mxu0 0
        %709 = vmatpush.bf16.msra.mxu0 0
        %710 = vmatpush.bf16.msra.mxu0 %v701
        %711 = vmatmul.bf16.gmra.mxu0 %v698
        %v712 = vpop.f32.mrf.mxu0
        %v713 = vadd.f32 0.0, %v712
        %v714 = vpop.f32.mrf.mxu0
        %715 = vdwg.mxu0
        %v717 = vunpack.c.l.b16 %v597
        %v718 = vpack.c.b16 %v717, %v717
        %719 = vrot.lane.b32.xlu0 %v718, 112
        %v720 = vpop.permute.xlu0 %719
        %721 = vrot.lane.b32.xlu0 %v605, 48
        %v722 = vpop.permute.xlu0 %721
        %v724 = vsel %vm608, %v720, 0
        %v727 = vsel %vm608, %v722, 0
        %729 = vmatpush.bf16.xpose.msra.mxu0 0
        %730 = vmatpush.bf16.xpose.msra.mxu0 0
        %731 = vmatpush.bf16.xpose.msra.mxu0 0
        %732 = vmatpush.bf16.xpose.msra.mxu0 0
        %733 = vmatpush.bf16.xpose.msra.mxu0 0
        %734 = vmatpush.bf16.xpose.msra.mxu0 0
        %735 = vmatpush.bf16.xpose.msra.mxu0 0
        %736 = vmatpush.bf16.xpose.msra.mxu0 %v727
        %737 = vmatmul.bf16.gmra.mxu0 %v724
        %v738 = vpop.f32.mrf.mxu0
        %v739 = vadd.f32 0.0, %v738
        %v740 = vpop.f32.mrf.mxu0
        %741 = vdwg.mxu0
        %v743 = vunpack.c.l.b16 %v598
        %v744 = vpack.c.b16 %v743, %v743
        %745 = vrot.lane.b32.xlu0 %v744, 112
        %v746 = vpop.permute.xlu0 %745
        %747 = vrot.lane.b32.xlu0 %v630, 48
        %v748 = vpop.permute.xlu0 %747
        %v750 = vsel %vm608, %v746, 0
        %v753 = vsel %vm608, %v748, 0
        %755 = vmatpush.bf16.xpose.msra.mxu0 0
        %756 = vmatpush.bf16.xpose.msra.mxu0 0
        %757 = vmatpush.bf16.xpose.msra.mxu0 0
        %758 = vmatpush.bf16.xpose.msra.mxu0 0
        %759 = vmatpush.bf16.xpose.msra.mxu0 0
        %760 = vmatpush.bf16.xpose.msra.mxu0 0
        %761 = vmatpush.bf16.xpose.msra.mxu0 0
        %762 = vmatpush.bf16.xpose.msra.mxu0 %v753
        %763 = vmatmul.bf16.gmra.mxu0 %v750
        %v764 = vpop.f32.mrf.mxu0
        %v765 = vadd.f32 0.0, %v764
        %v766 = vpop.f32.mrf.mxu0
        %767 = vdwg.mxu0
        %v768 = vsel %vm652, %v739, -inf
        %769 = vmax.xlane.f32.xlu0 %v768
        %v770 = vpop.xlane.xlu0 %769
        %v771 = vsel %vm652, %v765, -inf
        %772 = vmax.xlane.f32.xlu0 %v771
        %v773 = vpop.xlane.xlu0 %772
        %v774 = vsub.f32 %v739, %v770
        %v775 = vsub.f32 %v765, %v773
        %v776 = vmul.f32 %v774, 1.442695
        %v777 = vpow.pop %v776
        %v778 = vmul.f32 %v775, 1.442695
        %v779 = vpow.pop %v778
        %v780 = vsel %vm652, %v777, 0.0
        %781 = vadd.xlane.f32.xlu0 %v780
        %v782 = vpop.xlane.xlu0 %781
        %v783 = vsel %vm652, %v779, 0.0
        %784 = vadd.xlane.f32.xlu0 %v783
        %v785 = vpop.xlane.xlu0 %784
        %v786 = vrcp.pop %v782
        %v787 = vrcp.pop %v785
        %v788 = vmul.f32 %v777, %v786
        %v789 = vmul.f32 %v779, %v787
        %v790 = vpack.c.bf16 %v788, %v788
        %v791 = vpack.c.bf16 %v789, %v789
        %v793 = vunpack.c.l.b16 %v601
        %v794 = vpack.c.b16 %v793, %v793
        %795 = vrot.lane.b32.xlu0 %v794, 112
        %v796 = vpop.permute.xlu0 %795
        %v798 = vsel %vm652, %v790, 0
        %v801 = vsel %vm680, %v796, 0
        %803 = vmatpush.bf16.msra.mxu0 0
        %804 = vmatpush.bf16.msra.mxu0 0
        %805 = vmatpush.bf16.msra.mxu0 0
        %806 = vmatpush.bf16.msra.mxu0 0
        %807 = vmatpush.bf16.msra.mxu0 0
        %808 = vmatpush.bf16.msra.mxu0 0
        %809 = vmatpush.bf16.msra.mxu0 0
        %810 = vmatpush.bf16.msra.mxu0 %v801
        %811 = vmatmul.bf16.gmra.mxu0 %v798
        %v812 = vpop.f32.mrf.mxu0
        %v813 = vadd.f32 0.0, %v812
        %v814 = vpop.f32.mrf.mxu0
        %815 = vdwg.mxu0
        %v817 = vunpack.c.l.b16 %v602
        %v818 = vpack.c.b16 %v817, %v817
        %819 = vrot.lane.b32.xlu0 %v818, 112
        %v820 = vpop.permute.xlu0 %819
        %v822 = vsel %vm652, %v791, 0
        %v825 = vsel %vm680, %v820, 0
        %827 = vmatpush.bf16.msra.mxu0 0
        %828 = vmatpush.bf16.msra.mxu0 0
        %829 = vmatpush.bf16.msra.mxu0 0
        %830 = vmatpush.bf16.msra.mxu0 0
        %831 = vmatpush.bf16.msra.mxu0 0
        %832 = vmatpush.bf16.msra.mxu0 0
        %833 = vmatpush.bf16.msra.mxu0 0
        %834 = vmatpush.bf16.msra.mxu0 %v825
        %835 = vmatmul.bf16.gmra.mxu0 %v822
        %v836 = vpop.f32.mrf.mxu0
        %v837 = vadd.f32 0.0, %v836
        %v838 = vpop.f32.mrf.mxu0
        %839 = vdwg.mxu0
        %840 = vrot.lane.b32.xlu0 %v718, 96
        %v841 = vpop.permute.xlu0 %840
        %842 = vrot.lane.b32.xlu0 %v605, 32
        %v843 = vpop.permute.xlu0 %842
        %v845 = vsel %vm608, %v841, 0
        %v848 = vsel %vm608, %v843, 0
        %850 = vmatpush.bf16.xpose.msra.mxu0 0
        %851 = vmatpush.bf16.xpose.msra.mxu0 0
        %852 = vmatpush.bf16.xpose.msra.mxu0 0
        %853 = vmatpush.bf16.xpose.msra.mxu0 0
        %854 = vmatpush.bf16.xpose.msra.mxu0 0
        %855 = vmatpush.bf16.xpose.msra.mxu0 0
        %856 = vmatpush.bf16.xpose.msra.mxu0 0
        %857 = vmatpush.bf16.xpose.msra.mxu0 %v848
        %858 = vmatmul.bf16.gmra.mxu0 %v845
        %v859 = vpop.f32.mrf.mxu0
        %v860 = vadd.f32 0.0, %v859
        %v861 = vpop.f32.mrf.mxu0
        %862 = vdwg.mxu0
        %863 = vrot.lane.b32.xlu0 %v744, 96
        %v864 = vpop.permute.xlu0 %863
        %865 = vrot.lane.b32.xlu0 %v630, 32
        %v866 = vpop.permute.xlu0 %865
        %v868 = vsel %vm608, %v864, 0
        %v871 = vsel %vm608, %v866, 0
        %873 = vmatpush.bf16.xpose.msra.mxu0 0
        %874 = vmatpush.bf16.xpose.msra.mxu0 0
        %875 = vmatpush.bf16.xpose.msra.mxu0 0
        %876 = vmatpush.bf16.xpose.msra.mxu0 0
        %877 = vmatpush.bf16.xpose.msra.mxu0 0
        %878 = vmatpush.bf16.xpose.msra.mxu0 0
        %879 = vmatpush.bf16.xpose.msra.mxu0 0
        %880 = vmatpush.bf16.xpose.msra.mxu0 %v871
        %881 = vmatmul.bf16.gmra.mxu0 %v868
        %v882 = vpop.f32.mrf.mxu0
        %v883 = vadd.f32 0.0, %v882
        %v884 = vpop.f32.mrf.mxu0
        %885 = vdwg.mxu0
        %v886 = vsel %vm652, %v860, -inf
        %887 = vmax.xlane.f32.xlu0 %v886
        %v888 = vpop.xlane.xlu0 %887
        %v889 = vsel %vm652, %v883, -inf
        %890 = vmax.xlane.f32.xlu0 %v889
        %v891 = vpop.xlane.xlu0 %890
        %v892 = vsub.f32 %v860, %v888
        %v893 = vsub.f32 %v883, %v891
        %v894 = vmul.f32 %v892, 1.442695
        %v895 = vpow.pop %v894
        %v896 = vmul.f32 %v893, 1.442695
        %v897 = vpow.pop %v896
        %v898 = vsel %vm652, %v895, 0.0
        %899 = vadd.xlane.f32.xlu0 %v898
        %v900 = vpop.xlane.xlu0 %899
        %v901 = vsel %vm652, %v897, 0.0
        %902 = vadd.xlane.f32.xlu0 %v901
        %v903 = vpop.xlane.xlu0 %902
        %v904 = vrcp.pop %v900
        %v905 = vrcp.pop %v903
        %v906 = vmul.f32 %v895, %v904
        %v907 = vmul.f32 %v897, %v905
        %v908 = vpack.c.bf16 %v906, %v906
        %v909 = vpack.c.bf16 %v907, %v907
        %910 = vrot.lane.b32.xlu0 %v794, 96
        %v911 = vpop.permute.xlu0 %910
        %v913 = vsel %vm652, %v908, 0
        %v916 = vsel %vm680, %v911, 0
        %918 = vmatpush.bf16.msra.mxu0 0
        %919 = vmatpush.bf16.msra.mxu0 0
        %920 = vmatpush.bf16.msra.mxu0 0
        %921 = vmatpush.bf16.msra.mxu0 0
        %922 = vmatpush.bf16.msra.mxu0 0
        %923 = vmatpush.bf16.msra.mxu0 0
        %924 = vmatpush.bf16.msra.mxu0 0
        %925 = vmatpush.bf16.msra.mxu0 %v916
        %926 = vmatmul.bf16.gmra.mxu0 %v913
        %v927 = vpop.f32.mrf.mxu0
        %v928 = vadd.f32 0.0, %v927
        %v929 = vpop.f32.mrf.mxu0
        %930 = vdwg.mxu0
        %931 = vrot.lane.b32.xlu0 %v818, 96
        %v932 = vpop.permute.xlu0 %931
        %v934 = vsel %vm652, %v909, 0
        %v937 = vsel %vm680, %v932, 0
        %939 = vmatpush.bf16.msra.mxu0 0
        %940 = vmatpush.bf16.msra.mxu0 0
        %941 = vmatpush.bf16.msra.mxu0 0
        %942 = vmatpush.bf16.msra.mxu0 0
        %943 = vmatpush.bf16.msra.mxu0 0
        %944 = vmatpush.bf16.msra.mxu0 0
        %945 = vmatpush.bf16.msra.mxu0 0
        %946 = vmatpush.bf16.msra.mxu0 %v937
        %947 = vmatmul.bf16.gmra.mxu0 %v934
        %v948 = vpop.f32.mrf.mxu0
        %v949 = vadd.f32 0.0, %v948
        %v950 = vpop.f32.mrf.mxu0
        %951 = vdwg.mxu0
        %952 = vrot.lane.b32.xlu0 %v718, 80
        %v953 = vpop.permute.xlu0 %952
        %954 = vrot.lane.b32.xlu0 %v605, 16
        %v955 = vpop.permute.xlu0 %954
        %v957 = vsel %vm608, %v953, 0
        %v960 = vsel %vm608, %v955, 0
        %962 = vmatpush.bf16.xpose.msra.mxu0 0
        %963 = vmatpush.bf16.xpose.msra.mxu0 0
        %964 = vmatpush.bf16.xpose.msra.mxu0 0
        %965 = vmatpush.bf16.xpose.msra.mxu0 0
        %966 = vmatpush.bf16.xpose.msra.mxu0 0
        %967 = vmatpush.bf16.xpose.msra.mxu0 0
        %968 = vmatpush.bf16.xpose.msra.mxu0 0
        %969 = vmatpush.bf16.xpose.msra.mxu0 %v960
        %970 = vmatmul.bf16.gmra.mxu0 %v957
        %v971 = vpop.f32.mrf.mxu0
        %v972 = vadd.f32 0.0, %v971
        %v973 = vpop.f32.mrf.mxu0
        %974 = vdwg.mxu0
        %975 = vrot.lane.b32.xlu0 %v744, 80
        %v976 = vpop.permute.xlu0 %975
        %977 = vrot.lane.b32.xlu0 %v630, 16
        %v978 = vpop.permute.xlu0 %977
        %v980 = vsel %vm608, %v976, 0
        %v983 = vsel %vm608, %v978, 0
        %985 = vmatpush.bf16.xpose.msra.mxu0 0
        %986 = vmatpush.bf16.xpose.msra.mxu0 0
        %987 = vmatpush.bf16.xpose.msra.mxu0 0
        %988 = vmatpush.bf16.xpose.msra.mxu0 0
        %989 = vmatpush.bf16.xpose.msra.mxu0 0
        %990 = vmatpush.bf16.xpose.msra.mxu0 0
        %991 = vmatpush.bf16.xpose.msra.mxu0 0
        %992 = vmatpush.bf16.xpose.msra.mxu0 %v983
        %993 = vmatmul.bf16.gmra.mxu0 %v980
        %v994 = vpop.f32.mrf.mxu0
        %v995 = vadd.f32 0.0, %v994
        %v996 = vpop.f32.mrf.mxu0
        %997 = vdwg.mxu0
        %v998 = vsel %vm652, %v972, -inf
        %999 = vmax.xlane.f32.xlu0 %v998
        %v1000 = vpop.xlane.xlu0 %999
        %v1001 = vsel %vm652, %v995, -inf
        %1002 = vmax.xlane.f32.xlu0 %v1001
        %v1003 = vpop.xlane.xlu0 %1002
        %v1004 = vsub.f32 %v972, %v1000
        %v1005 = vsub.f32 %v995, %v1003
        %v1006 = vmul.f32 %v1004, 1.442695
        %v1007 = vpow.pop %v1006
        %v1008 = vmul.f32 %v1005, 1.442695
        %v1009 = vpow.pop %v1008
        %v1010 = vsel %vm652, %v1007, 0.0
        %1011 = vadd.xlane.f32.xlu0 %v1010
        %v1012 = vpop.xlane.xlu0 %1011
        %v1013 = vsel %vm652, %v1009, 0.0
        %1014 = vadd.xlane.f32.xlu0 %v1013
        %v1015 = vpop.xlane.xlu0 %1014
        %v1016 = vrcp.pop %v1012
        %v1017 = vrcp.pop %v1015
        %v1018 = vmul.f32 %v1007, %v1016
        %v1019 = vmul.f32 %v1009, %v1017
        %v1020 = vpack.c.bf16 %v1018, %v1018
        %v1021 = vpack.c.bf16 %v1019, %v1019
        %1022 = vrot.lane.b32.xlu0 %v794, 80
        %v1023 = vpop.permute.xlu0 %1022
        %v1025 = vsel %vm652, %v1020, 0
        %v1028 = vsel %vm680, %v1023, 0
        %1030 = vmatpush.bf16.msra.mxu0 0
        %1031 = vmatpush.bf16.msra.mxu0 0
        %1032 = vmatpush.bf16.msra.mxu0 0
        %1033 = vmatpush.bf16.msra.mxu0 0
        %1034 = vmatpush.bf16.msra.mxu0 0
        %1035 = vmatpush.bf16.msra.mxu0 0
        %1036 = vmatpush.bf16.msra.mxu0 0
        %1037 = vmatpush.bf16.msra.mxu0 %v1028
        %1038 = vmatmul.bf16.gmra.mxu0 %v1025
        %v1039 = vpop.f32.mrf.mxu0
        %v1040 = vadd.f32 0.0, %v1039
        %v1041 = vpop.f32.mrf.mxu0
        %1042 = vdwg.mxu0
        %1043 = vrot.lane.b32.xlu0 %v818, 80
        %v1044 = vpop.permute.xlu0 %1043
        %v1046 = vsel %vm652, %v1021, 0
        %v1049 = vsel %vm680, %v1044, 0
        %1051 = vmatpush.bf16.msra.mxu0 0
        %1052 = vmatpush.bf16.msra.mxu0 0
        %1053 = vmatpush.bf16.msra.mxu0 0
        %1054 = vmatpush.bf16.msra.mxu0 0
        %1055 = vmatpush.bf16.msra.mxu0 0
        %1056 = vmatpush.bf16.msra.mxu0 0
        %1057 = vmatpush.bf16.msra.mxu0 0
        %1058 = vmatpush.bf16.msra.mxu0 %v1049
        %1059 = vmatmul.bf16.gmra.mxu0 %v1046
        %v1060 = vpop.f32.mrf.mxu0
        %v1061 = vadd.f32 0.0, %v1060
        %v1062 = vpop.f32.mrf.mxu0
        %1063 = vdwg.mxu0
        %1066 = vrot.lane.b32.xlu0 %v813, 16
        %v1067 = vpop.permute.xlu0 %1066
        %1068 = vrot.lane.b32.xlu0 %v837, 16
        %v1069 = vpop.permute.xlu0 %1068
        %1074 = vrot.lane.b32.xlu0 %v928, 32
        %v1075 = vpop.permute.xlu0 %1074
        %1076 = vrot.lane.b32.xlu0 %v949, 32
        %v1077 = vpop.permute.xlu0 %1076
        %1082 = vrot.lane.b32.xlu0 %v1040, 48
        %v1083 = vpop.permute.xlu0 %1082
        %1084 = vrot.lane.b32.xlu0 %v1061, 48
        %v1085 = vpop.permute.xlu0 %1084
        %v1088 = vsel %vm608, %v694, %v1067
        %v1089 = vsel %vm608, %v713, %v1069
        %vm1090 = vcmask 261120
        %v1091 = vsel %vm1090, %v1088, %v1075
        %v1092 = vsel %vm1090, %v1089, %v1077
        %vm1093 = vcmask 392192
        %v1094 = vsel %vm1093, %v1091, %v1083
        %v1095 = vsel %vm1093, %v1092, %v1085
        %v1096 = vpack.c.bf16 %v1095, %v1094
        %v1097 = vld [vmem:[%s5] sm:$0xf]
        %v1098 = vld [vmem:[%s5 + $0x4] sm:$0xf]
        %v1099 = vld [vmem:[%s5 + $0x8] sm:$0xf]
        %v1100 = vld [vmem:[%s5 + $0xc] sm:$0xf]
        %v1101 = vld [vmem:[%s5 + $0x10] sm:$0xf]
        %v1102 = vld [vmem:[%s5 + $0x14] sm:$0xf]
        %v1103 = vld [vmem:[%s5 + $0x18] sm:$0xf]
        %v1104 = vld [vmem:[%s5 + $0x1c] sm:$0xf]
        %v1105 = vld [vmem:[%s6] sm:$0x1]
        %v1107 = vperm.slane %v1105, 0
        %v1117 = vunpack.c.l.b16 %v1097
        %v1118 = vunpack.c.l.b16 %v1098
        %v1119 = vunpack.c.l.b16 %v1099
        %v1120 = vunpack.c.l.b16 %v1100
        %v1121 = vunpack.c.l.b16 %v1101
        %v1122 = vunpack.c.l.b16 %v1102
        %v1123 = vunpack.c.l.b16 %v1103
        %v1124 = vunpack.c.l.b16 %v1104
        %v1125 = vpack.c.b16 %v1118, %v1117
        %v1126 = vpack.c.b16 %v1120, %v1119
        %v1127 = vpack.c.b16 %v1122, %v1121
        %v1128 = vpack.c.b16 %v1124, %v1123
        %v1134 = vsel %vm447, %v1096, 0
        %1136 = vmatpush.bf16.msra.mxu0 0
        %1137 = vmatpush.bf16.msra.mxu0 0
        %1138 = vmatpush.bf16.msra.mxu0 0
        %1139 = vmatpush.bf16.msra.mxu0 0
        %1140 = vmatpush.bf16.msra.mxu0 %v1128
        %1141 = vmatpush.bf16.msra.mxu0 %v1127
        %1142 = vmatpush.bf16.msra.mxu0 %v1126
        %1143 = vmatpush.bf16.msra.mxu0 %v1125
        %1144 = vmatmul.bf16.gmra.mxu0 %v1134
        %v1145 = vpop.f32.mrf.mxu0
        %v1146 = vadd.f32 %v1107, %v1145
        %v1147 = vpop.f32.mrf.mxu0
        %v1148 = vadd.f32 %v1107, %v1147
        %1149 = vdwg.mxu0
        %v1150 = vld [vmem:[%s439] sm:$0xff]
        %v1151 = vld [vmem:[%s439 + $0x8] sm:$0xff]
        %v1152 = vadd.f32 %v1150, %v1146
        %v1153 = vadd.f32 %v1151, %v1148
        %v1154 = vld [vmem:[%s7] sm:$0x1]
        %v1155 = vld [vmem:[%s8] sm:$0x1]
        %v1156 = vsel %vm447, %v1152, 0.0
        %1157 = vadd.xlane.f32.xlu0 %v1156
        %v1158 = vpop.xlane.xlu0 %1157
        %v1159 = vsel %vm447, %v1153, 0.0
        %1160 = vadd.xlane.f32.xlu0 %v1159
        %v1161 = vpop.xlane.xlu0 %1160
        %v1162 = vmul.f32 %v1158, %v460
        %v1163 = vmul.f32 %v1161, %v460
        %v1164 = vsub.f32 %v1152, %v1162
        %v1165 = vsub.f32 %v1153, %v1163
        %v1166 = vmul.f32 %v1164, %v1164
        %v1167 = vmul.f32 %v1165, %v1165
        %v1168 = vsel %vm447, %v1166, 0.0
        %1169 = vadd.xlane.f32.xlu0 %v1168
        %v1170 = vpop.xlane.xlu0 %1169
        %v1171 = vsel %vm447, %v1167, 0.0
        %1172 = vadd.xlane.f32.xlu0 %v1171
        %v1173 = vpop.xlane.xlu0 %1172
        %v1174 = vmul.f32 %v1170, %v460
        %v1175 = vmul.f32 %v1173, %v460
        %v1176 = vadd.f32 %v1174, 1e-05
        %v1177 = vadd.f32 %v1175, 1e-05
        %v1178 = vrsqrt.pop %v1176
        %v1179 = vmul.f32 %v1178, %v1176
        %v1180 = vmul.f32 %v1179, %v1178
        %v1181 = vmul.f32 0.5, %v1180
        %v1182 = vsub.f32 1.5, %v1181
        %v1183 = vmul.f32 %v1178, %v1182
        %vm1184 = vweird.f32 %v1176
        %vm1185 = vweird.f32 %v1178
        %vm1186 = vmor %vm1184, %vm1185
        %v1187 = vsel %vm1186, %v1178, %v1183
        %v1188 = vrsqrt.pop %v1177
        %v1189 = vmul.f32 %v1188, %v1177
        %v1190 = vmul.f32 %v1189, %v1188
        %v1191 = vmul.f32 0.5, %v1190
        %v1192 = vsub.f32 1.5, %v1191
        %v1193 = vmul.f32 %v1188, %v1192
        %vm1194 = vweird.f32 %v1177
        %vm1195 = vweird.f32 %v1188
        %vm1196 = vmor %vm1194, %vm1195
        %v1197 = vsel %vm1196, %v1188, %v1193
        %v1198 = vmul.f32 %v1164, %v1187
        %v1199 = vmul.f32 %v1165, %v1197
        %v1201 = vperm.slane %v1154, 0
        %v1203 = vmul.f32 %v1198, %v1201
        %v1204 = vmul.f32 %v1199, %v1201
        %v1206 = vperm.slane %v1155, 0
        %v1208 = vadd.f32 %v1203, %v1206
        %v1209 = vadd.f32 %v1204, %v1206
        %v1210 = vpack.c.bf16 %v1209, %v1208
        %v1211 = vld [vmem:[%s9] sm:$0xff]
        %v1212 = vld [vmem:[%s9 + $0x8] sm:$0xff]
        %v1213 = vld [vmem:[%s9 + $0x10] sm:$0xff]
        %v1214 = vld [vmem:[%s9 + $0x18] sm:$0xff]
        %v1215 = vld [vmem:[%s9 + $0x20] sm:$0xff]
        %v1216 = vld [vmem:[%s9 + $0x28] sm:$0xff]
        %v1217 = vld [vmem:[%s9 + $0x30] sm:$0xff]
        %v1218 = vld [vmem:[%s9 + $0x38] sm:$0xff]
        %v1219 = vld [vmem:[%s10] sm:$0x3]
        %v1221 = vperm.slane %v1219, 0
        %v1222 = vperm.slane %v1219, 1
        %v1233 = vunpack.c.l.b16 %v1211
        %v1234 = vunpack.c.h.b16 %v1211
        %v1235 = vunpack.c.l.b16 %v1212
        %v1236 = vunpack.c.h.b16 %v1212
        %v1237 = vunpack.c.l.b16 %v1213
        %v1238 = vunpack.c.h.b16 %v1213
        %v1239 = vunpack.c.l.b16 %v1214
        %v1240 = vunpack.c.h.b16 %v1214
        %v1241 = vunpack.c.l.b16 %v1215
        %v1242 = vunpack.c.h.b16 %v1215
        %v1243 = vunpack.c.l.b16 %v1216
        %v1244 = vunpack.c.h.b16 %v1216
        %v1245 = vunpack.c.l.b16 %v1217
        %v1246 = vunpack.c.h.b16 %v1217
        %v1247 = vunpack.c.l.b16 %v1218
        %v1248 = vunpack.c.h.b16 %v1218
        %v1249 = vpack.c.b16 %v1235, %v1233
        %v1250 = vpack.c.b16 %v1236, %v1234
        %v1251 = vpack.c.b16 %v1239, %v1237
        %v1252 = vpack.c.b16 %v1240, %v1238
        %v1253 = vpack.c.b16 %v1243, %v1241
        %v1254 = vpack.c.b16 %v1244, %v1242
        %v1255 = vpack.c.b16 %v1247, %v1245
        %v1256 = vpack.c.b16 %v1248, %v1246
        %v1266 = vsel %vm447, %v1210, 0
        %1268 = vmatpush.bf16.msra.mxu0 0
        %1269 = vmatpush.bf16.msra.mxu0 0
        %1270 = vmatpush.bf16.msra.mxu0 0
        %1271 = vmatpush.bf16.msra.mxu0 0
        %1272 = vmatpush.bf16.msra.mxu0 %v1255
        %1273 = vmatpush.bf16.msra.mxu0 %v1253
        %1274 = vmatpush.bf16.msra.mxu0 %v1251
        %1275 = vmatpush.bf16.msra.mxu0 %v1249
        %1276 = vmatmul.bf16.gmra.mxu0 %v1266
        %v1277 = vpop.f32.mrf.mxu0
        %v1278 = vadd.f32 %v1221, %v1277
        %v1279 = vpop.f32.mrf.mxu0
        %v1280 = vadd.f32 %v1221, %v1279
        %1281 = vdwg.mxu0
        %1282 = vmatpush.bf16.msra.mxu0 0
        %1283 = vmatpush.bf16.msra.mxu0 0
        %1284 = vmatpush.bf16.msra.mxu0 0
        %1285 = vmatpush.bf16.msra.mxu0 0
        %1286 = vmatpush.bf16.msra.mxu0 %v1256
        %1287 = vmatpush.bf16.msra.mxu0 %v1254
        %1288 = vmatpush.bf16.msra.mxu0 %v1252
        %1289 = vmatpush.bf16.msra.mxu0 %v1250
        %1290 = vmatmul.bf16.gmra.mxu0 %v1266
        %v1291 = vpop.f32.mrf.mxu0
        %v1292 = vadd.f32 %v1222, %v1291
        %v1293 = vpop.f32.mrf.mxu0
        %v1294 = vadd.f32 %v1222, %v1293
        %1295 = vdwg.mxu0
        %vm1296 = vcmp.gt.f32.partialorder %v1278, 0.0
        %vm1297 = vcmp.gt.f32.partialorder %v1292, 0.0
        %vm1298 = vcmp.gt.f32.partialorder %v1280, 0.0
        %vm1299 = vcmp.gt.f32.partialorder %v1294, 0.0
        %v1300 = vmul.f32 %v1278, 0.3
        %v1301 = vmul.f32 %v1292, 0.3
        %v1302 = vmul.f32 %v1280, 0.3
        %v1303 = vmul.f32 %v1294, 0.3
        %v1304 = vsel %vm1296, %v1278, %v1300
        %v1305 = vsel %vm1297, %v1292, %v1301
        %v1306 = vsel %vm1298, %v1280, %v1302
        %v1307 = vsel %vm1299, %v1294, %v1303
        %v1308 = vpack.c.bf16 %v1306, %v1304
        %v1309 = vpack.c.bf16 %v1307, %v1305
        %v1310 = vld [vmem:[%s11] sm:$0xf]
        %v1311 = vld [vmem:[%s11 + $0x4] sm:$0xf]
        %v1312 = vld [vmem:[%s11 + $0x8] sm:$0xf]
        %v1313 = vld [vmem:[%s11 + $0xc] sm:$0xf]
        %v1314 = vld [vmem:[%s11 + $0x10] sm:$0xf]
        %v1315 = vld [vmem:[%s11 + $0x14] sm:$0xf]
        %v1316 = vld [vmem:[%s11 + $0x18] sm:$0xf]
        %v1317 = vld [vmem:[%s11 + $0x1c] sm:$0xf]
        %v1318 = vld [vmem:[%s11 + $0x20] sm:$0xf]
        %v1319 = vld [vmem:[%s11 + $0x24] sm:$0xf]
        %v1320 = vld [vmem:[%s11 + $0x28] sm:$0xf]
        %v1321 = vld [vmem:[%s11 + $0x2c] sm:$0xf]
        %v1322 = vld [vmem:[%s11 + $0x30] sm:$0xf]
        %v1323 = vld [vmem:[%s11 + $0x34] sm:$0xf]
        %v1324 = vld [vmem:[%s11 + $0x38] sm:$0xf]
        %v1325 = vld [vmem:[%s11 + $0x3c] sm:$0xf]
        %v1326 = vld [vmem:[%s11 + $0x40] sm:$0xf]
        %v1327 = vld [vmem:[%s11 + $0x44] sm:$0xf]
        %v1328 = vld [vmem:[%s11 + $0x48] sm:$0xf]
        %v1329 = vld [vmem:[%s11 + $0x4c] sm:$0xf]
        %v1330 = vld [vmem:[%s11 + $0x50] sm:$0xf]
        %v1331 = vld [vmem:[%s11 + $0x54] sm:$0xf]
        %v1332 = vld [vmem:[%s11 + $0x58] sm:$0xf]
        %v1333 = vld [vmem:[%s11 + $0x5c] sm:$0xf]
        %v1334 = vld [vmem:[%s11 + $0x60] sm:$0xf]
        %v1335 = vld [vmem:[%s11 + $0x64] sm:$0xf]
        %v1336 = vld [vmem:[%s11 + $0x68] sm:$0xf]
        %v1337 = vld [vmem:[%s11 + $0x6c] sm:$0xf]
        %v1338 = vld [vmem:[%s11 + $0x70] sm:$0xf]
        %v1339 = vld [vmem:[%s11 + $0x74] sm:$0xf]
        %v1340 = vld [vmem:[%s11 + $0x78] sm:$0xf]
        %v1341 = vld [vmem:[%s11 + $0x7c] sm:$0xf]
        %v1342 = vld [vmem:[%s12] sm:$0x1]
        %v1344 = vperm.slane %v1342, 0
        %v1378 = vunpack.c.l.b16 %v1310
        %v1379 = vunpack.c.l.b16 %v1311
        %v1380 = vunpack.c.l.b16 %v1312
        %v1381 = vunpack.c.l.b16 %v1313
        %v1382 = vunpack.c.l.b16 %v1314
        %v1383 = vunpack.c.l.b16 %v1315
        %v1384 = vunpack.c.l.b16 %v1316
        %v1385 = vunpack.c.l.b16 %v1317
        %v1386 = vunpack.c.l.b16 %v1318
        %v1387 = vunpack.c.l.b16 %v1319
        %v1388 = vunpack.c.l.b16 %v1320
        %v1389 = vunpack.c.l.b16 %v1321
        %v1390 = vunpack.c.l.b16 %v1322
        %v1391 = vunpack.c.l.b16 %v1323
        %v1392 = vunpack.c.l.b16 %v1324
        %v1393 = vunpack.c.l.b16 %v1325
        %v1394 = vunpack.c.l.b16 %v1326
        %v1395 = vunpack.c.l.b16 %v1327
        %v1396 = vunpack.c.l.b16 %v1328
        %v1397 = vunpack.c.l.b16 %v1329
        %v1398 = vunpack.c.l.b16 %v1330
        %v1399 = vunpack.c.l.b16 %v1331
        %v1400 = vunpack.c.l.b16 %v1332
        %v1401 = vunpack.c.l.b16 %v1333
        %v1402 = vunpack.c.l.b16 %v1334
        %v1403 = vunpack.c.l.b16 %v1335
        %v1404 = vunpack.c.l.b16 %v1336
        %v1405 = vunpack.c.l.b16 %v1337
        %v1406 = vunpack.c.l.b16 %v1338
        %v1407 = vunpack.c.l.b16 %v1339
        %v1408 = vunpack.c.l.b16 %v1340
        %v1409 = vunpack.c.l.b16 %v1341
        %v1410 = vpack.c.b16 %v1379, %v1378
        %v1411 = vpack.c.b16 %v1381, %v1380
        %v1412 = vpack.c.b16 %v1383, %v1382
        %v1413 = vpack.c.b16 %v1385, %v1384
        %v1414 = vpack.c.b16 %v1387, %v1386
        %v1415 = vpack.c.b16 %v1389, %v1388
        %v1416 = vpack.c.b16 %v1391, %v1390
        %v1417 = vpack.c.b16 %v1393, %v1392
        %v1418 = vpack.c.b16 %v1395, %v1394
        %v1419 = vpack.c.b16 %v1397, %v1396
        %v1420 = vpack.c.b16 %v1399, %v1398
        %v1421 = vpack.c.b16 %v1401, %v1400
        %v1422 = vpack.c.b16 %v1403, %v1402
        %v1423 = vpack.c.b16 %v1405, %v1404
        %v1424 = vpack.c.b16 %v1407, %v1406
        %v1425 = vpack.c.b16 %v1409, %v1408
        %1442 = vmatpush.bf16.msra.mxu0 %v1417
        %1443 = vmatpush.bf16.msra.mxu0 %v1416
        %1444 = vmatpush.bf16.msra.mxu0 %v1415
        %1445 = vmatpush.bf16.msra.mxu0 %v1414
        %1446 = vmatpush.bf16.msra.mxu0 %v1413
        %1447 = vmatpush.bf16.msra.mxu0 %v1412
        %1448 = vmatpush.bf16.msra.mxu0 %v1411
        %1449 = vmatpush.bf16.msra.mxu0 %v1410
        %1450 = vmatmul.bf16.gmra.mxu0 %v1308
        %v1451 = vpop.f32.mrf.mxu0
        %v1452 = vadd.f32 %v1344, %v1451
        %v1453 = vpop.f32.mrf.mxu0
        %v1454 = vadd.f32 %v1344, %v1453
        %1455 = vdwg.mxu0
        %1456 = vmatpush.bf16.msra.mxu0 %v1425
        %1457 = vmatpush.bf16.msra.mxu0 %v1424
        %1458 = vmatpush.bf16.msra.mxu0 %v1423
        %1459 = vmatpush.bf16.msra.mxu0 %v1422
        %1460 = vmatpush.bf16.msra.mxu0 %v1421
        %1461 = vmatpush.bf16.msra.mxu0 %v1420
        %1462 = vmatpush.bf16.msra.mxu0 %v1419
        %1463 = vmatpush.bf16.msra.mxu0 %v1418
        %1464 = vmatmul.bf16.gmra.mxu0 %v1309
        %v1465 = vpop.f32.mrf.mxu0
        %v1466 = vadd.f32 %v1452, %v1465
        %v1467 = vpop.f32.mrf.mxu0
        %v1468 = vadd.f32 %v1454, %v1467
        %1469 = vdwg.mxu0
        %v1470 = vadd.f32 %v1152, %v1466
        %v1471 = vadd.f32 %v1153, %v1468
        %1472 = vst.msk [vmem:[%s434] sm:$0xff] %vm447, %v1470
        %1473 = vst.msk [vmem:[%s434 + $0x8] sm:$0xff] %vm447, %v1471
        %s1474 = sand.u32 %s313, 1
        %s1475 = scalar_lea.sflag [#allocation3], %s1474
        %s1476 = sand.u32 %s313, 1
        %s1477 = smul.addr %s1476, 16
        %s1478 = scalar_lea.vmem [#allocation2], %s1477
        // Predicated region
        $region73: #{sab_forward.1} parent=71 // pred_check
          %p1479 = pneg %p323
        $region74: #{sab_forward.1} parent=71 // pred_check_branch
          %1481 = sbr.rel (%p1479) target = $region76
        $region75: #{sab_forward.1} parent=71 // pred_region
          %s1482 = smul.u32 2, %s27
          %1484 = vsyncadd %s1475, 0
          %s1485 = smul.addr %s1482, 8
          %s1486 = scalar_lea.hbm %s13, %s1485
          %s1487 = sshll.u32 %s1478, 4
          %s1488 = int_to_ptr.vmem [resolvable:$true] %s1487
          %s1489 = sshll.u32 %s1486, 4
          %s1490 = int_to_ptr.hbm [resolvable:$true] %s1489
          %1495 = dma.vmem_to_hbm [thread:$0]  %s1488, 256, %s1490, %s1475, 128, 128, 8
        $region76: #{sab_forward.1} parent=71 // pred_fallthru
          _
      $region72: #{sab_forward.1} parent=5 // pred_fallthru
        _
      %p1496 = scmp.le.s32.totalorder 2, %s22
      // Predicated region
      $region77: #{sab_forward.1} parent=5 // pred_check
        %p1497 = pneg %p1496
      $region78: #{sab_forward.1} parent=5 // pred_check_branch
        %1499 = sbr.rel (%p1497) target = $region80
      $region79: #{sab_forward.1} parent=5 // pred_region
        %s1500 = ssub.s32 %s22, 2
        // Predicated region
        $region81: #{sab_forward.1} parent=79 // pred_check
          %p1501 = pneg %p329
        $region82: #{sab_forward.1} parent=79 // pred_check_branch
          %1503 = sbr.rel (%p1501) target = $region84
        $region83: #{sab_forward.1} parent=79 // pred_region
          %s1504 = sand.u32 %s314, 1
          %s1505 = scalar_lea.sflag [#allocation3], %s1504
          %s1506 = sand.u32 %s314, 1
          %s1507 = smul.addr %s1506, 16
          %s1508 = scalar_lea.vmem [#allocation2], %s1507
          %1510 = dma.done %s1505, 256
        $region84: #{sab_forward.1} parent=79 // pred_fallthru
          _
      $region80: #{sab_forward.1} parent=5 // pred_fallthru
        _
    $region6: #{sab_forward.1} parent=1 // loop_footer
      %s26 = sadd.s32 1, %s22
    $region7: #{sab_forward.1} parent=1 // loop_footer_branch
      %21 = sbr.rel target = $region3
    $region8: #{sab_forward.1} parent=1 // loop_exit
      _
    %1511 = vsyncpa [#allocation3], 1
    %s1512 = scalar_lea.sflag [#allocation3], 1
    %1513 = vsyncpa %s1512, 1

</llo_original>
